<compile_context>
chip_gen: v5e
topology: v5e:2x2
jax: 0.10.0
libtpu: 0.0.40
codegen_flags: <defaults>
</compile_context>

<pallas_src>
import math

import jax
import jax.numpy as jnp
from jax.experimental import pallas as pl
from jax.experimental.pallas import tpu as pltpu


def _time_embed_kernel(x_ref, w2pi_ref, wlin_ref, b_ref, o_ref):
    # x_ref   : (TB, 1)                 f32  timestep column
    # w2pi_ref: (1, half)               f32  Fourier weights with 2*pi pre-folded
    # wlin_ref: (embed_dim, embed_dim)  bf16 Linear weight, (in, out) layout
    # b_ref   : (1, embed_dim)          f32  Linear bias
    # o_ref   : (TB, embed_dim)         f32  swish(Linear(fourier_feats))
    half = w2pi_ref.shape[1]

    # f32 outer product + transcendentals (keep full range/precision here).
    proj = x_ref[...] * w2pi_ref[...]                      # (TB, half)
    s = jnp.sin(proj).astype(jnp.bfloat16)                 # cast AFTER sin/cos
    c = jnp.cos(proj).astype(jnp.bfloat16)

    # cat([sin, cos], -1) @ Wl  ==  sin @ Wl[:half] + cos @ Wl[half:]
    # bf16 x bf16 -> f32 accumulate on the MXU.
    z = jnp.dot(s, wlin_ref[:half, :], preferred_element_type=jnp.float32)
    z = z + jnp.dot(c, wlin_ref[half:, :], preferred_element_type=jnp.float32)
    z = z + b_ref[...]

    # swish / SiLU: x * sigmoid(x)  (ScoreNet.act), f32.
    o_ref[...] = z * jax.nn.sigmoid(z)


def _round_up(n, m):
    return ((n + m - 1) // m) * m


def _choose_tb(B, block_b):
    """Batch tile: multiple of 8 sublanes; >=2 grid steps when B >= 16 (v7x)."""
    if B < 16:
        # Single block equal to the full batch dim (always a legal block shape).
        return B
    return min(block_b, _round_up(pl.cdiv(B, 2), 8))


def prepare_time_embed_params(W, W_linear, b_linear):
    """One-time parameter prep, hoisted out of the per-call hot path.

    W        : (embed_dim//2,)         fixed gaussian weights (scale already applied)
    W_linear : (embed_dim, embed_dim)  torch nn.Linear weight (out, in)
    b_linear : (embed_dim,)            torch nn.Linear bias
    """
    half = W.shape[0]
    embed_dim = 2 * half
    assert W_linear.shape == (embed_dim, embed_dim)
    assert half % 128 == 0, "embed_dim//2 must be lane-aligned (multiple of 128)"
    # Fold 2*pi into the fixed Fourier weights once; stays f32.
    w2pi = (W.astype(jnp.float32) * (2.0 * math.pi)).reshape(1, half)
    # torch Linear computes x @ W^T + b; pre-transpose to (in, out) and cast to
    # bf16 once so the kernel streams a 0.5 MiB weight instead of 1 MiB f32.
    wlin = W_linear.astype(jnp.bfloat16).T
    bias = b_linear.astype(jnp.float32).reshape(1, embed_dim)
    return w2pi, wlin, bias


def scorenet_time_embed(t, params, *, block_b=256):
    """Fused GaussianFourierProjection -> Linear -> swish.

    t      : (B,) float timesteps
    params : output of prepare_time_embed_params (prepared once, reused per call)
    returns: (B, embed_dim) float32
    """
    w2pi, wlin, bias = params
    half = w2pi.shape[1]
    embed_dim = 2 * half

    B = t.shape[0]
    TB = _choose_tb(B, block_b)
    grid = (pl.cdiv(B, TB),)

    x2d = t.reshape(B, 1).astype(jnp.float32)

    # Note: w2pi / wlin / bias are grid-invariant (constant index_map); if VMEM
    # ever gets tight after tile scaling, single-buffer them via
    # pipeline_mode=pl.Buffered(1).  Not needed at this footprint (~0.5 MiB).
    out = pl.pallas_call(
        _time_embed_kernel,
        out_shape=jax.ShapeDtypeStruct((B, embed_dim), jnp.float32),
        grid_spec=pltpu.PrefetchScalarGridSpec(
            num_scalar_prefetch=0,
            grid=grid,
            in_specs=[
                pl.BlockSpec((TB, 1), lambda i: (i, 0)),                 # t tile
                pl.BlockSpec((1, half), lambda i: (0, 0)),               # 2*pi*W
                pl.BlockSpec((embed_dim, embed_dim), lambda i: (0, 0)),  # Linear W (bf16)
                pl.BlockSpec((1, embed_dim), lambda i: (0, 0)),          # Linear b
            ],
            out_specs=pl.BlockSpec((TB, embed_dim), lambda i: (i, 0)),
        ),
        compiler_params=pltpu.CompilerParams(
            dimension_semantics=("parallel",),
        ),
    )(x2d, w2pi, wlin, bias)

    return out


if __name__ == "__main__":
    embed_dim = 512            # ScoreNet default embed_dim
    half = embed_dim // 2      # 256 -> lane-aligned halves
    scale = 30.0
    batch = 8

    key = jax.random.PRNGKey(0)
    kt, kw, kl, kb = jax.random.split(key, 4)

    # Fixed Fourier weights (mirrors torch.randn(embed_dim//2) * scale).
    W = jax.random.normal(kw, (half,), dtype=jnp.float32) * scale
    # nn.Linear(embed_dim, embed_dim) parameters.
    W_linear = jax.random.normal(kl, (embed_dim, embed_dim), dtype=jnp.float32) * (
        1.0 / math.sqrt(embed_dim)
    )
    b_linear = jax.random.normal(kb, (embed_dim,), dtype=jnp.float32) * 0.01
    # Example timesteps.
    t = jax.random.uniform(kt, (batch,), dtype=jnp.float32)

    # One-time parameter prep (hoisted out of the hot path).
    params = prepare_time_embed_params(W, W_linear, b_linear)
    params = jax.block_until_ready(params)

    out = scorenet_time_embed(t, params)
    out = jax.block_until_ready(out)

    # Pure-JAX reference (same math as the torch forward, full f32).
    proj_ref = t[:, None] * W[None, :] * 2.0 * math.pi
    feats_ref = jnp.concatenate([jnp.sin(proj_ref), jnp.cos(proj_ref)], axis=-1)
    z_ref = (
        jnp.matmul(feats_ref, W_linear.T, precision=jax.lax.Precision.HIGHEST)
        + b_linear
    )
    ref = z_ref * jax.nn.sigmoid(z_ref)

    assert out.shape == (batch, embed_dim)
    assert jnp.allclose(out, ref, atol=2e-2, rtol=2e-2), float(
        jnp.max(jnp.abs(out - ref))
    )

    print("KERNEL_OK")
</pallas_src>

<mosaic_0001>
module attributes {stable_mosaic.version = 11 : i64} {
  func.func @_time_embed_kernel(%arg0: i32, %arg1: memref<8x1xf32, #tpu.memory_space<vmem>>, %arg2: memref<1x256xf32, #tpu.memory_space<vmem>>, %arg3: memref<512x512xbf16, #tpu.memory_space<vmem>>, %arg4: memref<1x512xf32, #tpu.memory_space<vmem>>, %arg5: memref<8x512xf32, #tpu.memory_space<vmem>>) attributes {dimension_semantics = [#tpu.dimension_semantics<parallel>], iteration_bounds = array<i64: 1>, scalar_prefetch = 0 : i64, scratch_operands = 0 : i64, tpu.core_type = #tpu.core_type<tc>, window_params = [{transform_indices = @transform_0, window_bounds = array<i64: 8, 1>}, {pipeline_mode = #tpu.pipeline_mode<synchronous>, transform_indices = @transform_1, window_bounds = array<i64: 1, 256>}, {pipeline_mode = #tpu.pipeline_mode<synchronous>, transform_indices = @transform_2, window_bounds = array<i64: 512, 512>}, {pipeline_mode = #tpu.pipeline_mode<synchronous>, transform_indices = @transform_3, window_bounds = array<i64: 1, 512>}, {transform_indices = @transform_4, window_bounds = array<i64: 8, 512>}]} {
    %c0 = arith.constant 0 : index
    %c0_0 = arith.constant 0 : index
    %0 = vector.load %arg1[%c0, %c0_0] : memref<8x1xf32, #tpu.memory_space<vmem>>, vector<8x1xf32>
    %c0_1 = arith.constant 0 : index
    %c0_2 = arith.constant 0 : index
    %1 = vector.load %arg2[%c0_1, %c0_2] : memref<1x256xf32, #tpu.memory_space<vmem>>, vector<1x256xf32>
    %2 = vector.broadcast %0 : vector<8x1xf32> to vector<8x256xf32>
    %3 = vector.broadcast %1 : vector<1x256xf32> to vector<8x256xf32>
    %4 = arith.mulf %2, %3 : vector<8x256xf32>
    %5 = math.sin %4 : vector<8x256xf32>
    %6 = arith.truncf %5 : vector<8x256xf32> to vector<8x256xbf16>
    %7 = math.cos %4 : vector<8x256xf32>
    %8 = arith.truncf %7 : vector<8x256xf32> to vector<8x256xbf16>
    %c0_3 = arith.constant 0 : index
    %c0_4 = arith.constant 0 : index
    %9 = vector.load %arg3[%c0_3, %c0_4] : memref<512x512xbf16, #tpu.memory_space<vmem>>, vector<256x512xbf16>
    %cst = arith.constant dense<0.000000e+00> : vector<8x512xf32>
    %10 = tpu.matmul %6, %9, %cst {dimension_numbers = #tpu.dot_dimension_numbers<[1], [0], [0], [1], [0, 0, 1, 1], [], []>} : vector<8x256xbf16>, vector<256x512xbf16>, vector<8x512xf32> -> vector<8x512xf32>
    %c256 = arith.constant 256 : index
    %c0_5 = arith.constant 0 : index
    %11 = vector.load %arg3[%c256, %c0_5] : memref<512x512xbf16, #tpu.memory_space<vmem>>, vector<256x512xbf16>
    %cst_6 = arith.constant dense<0.000000e+00> : vector<8x512xf32>
    %12 = tpu.matmul %8, %11, %cst_6 {dimension_numbers = #tpu.dot_dimension_numbers<[1], [0], [0], [1], [0, 0, 1, 1], [], []>} : vector<8x256xbf16>, vector<256x512xbf16>, vector<8x512xf32> -> vector<8x512xf32>
    %13 = arith.addf %10, %12 : vector<8x512xf32>
    %c0_7 = arith.constant 0 : index
    %c0_8 = arith.constant 0 : index
    %14 = vector.load %arg4[%c0_7, %c0_8] : memref<1x512xf32, #tpu.memory_space<vmem>>, vector<1x512xf32>
    %15 = vector.broadcast %14 : vector<1x512xf32> to vector<8x512xf32>
    %16 = arith.addf %13, %15 : vector<8x512xf32>
    %17 = arith.negf %16 : vector<8x512xf32>
    %18 = math.exp %17 : vector<8x512xf32>
    %cst_9 = arith.constant 1.000000e+00 : f32
    %19 = vector.broadcast %cst_9 : f32 to vector<8x512xf32>
    %20 = arith.addf %19, %18 : vector<8x512xf32>
    %21 = arith.divf %19, %20 : vector<8x512xf32>
    %22 = arith.mulf %16, %21 : vector<8x512xf32>
    %c0_10 = arith.constant 0 : index
    %c0_11 = arith.constant 0 : index
    %23 = vector.load %arg5[%c0_10, %c0_11] : memref<8x512xf32, #tpu.memory_space<vmem>>, vector<8x512xf32>
    tpu.vector_store %arg5[%c0_10, %c0_11], %22 {strides = array<i32>} : memref<8x512xf32, #tpu.memory_space<vmem>>, vector<8x512xf32>,
    return
  }
  func.func @transform_0(%arg0: i32) -> (i32, i32) {
    %c0_i32 = arith.constant 0 : i32
    %c0_i32_0 = arith.constant 0 : i32
    return %arg0, %c0_i32 : i32, i32
  }
  func.func @transform_1(%arg0: i32) -> (i32, i32) {
    %c0_i32 = arith.constant 0 : i32
    %c0_i32_0 = arith.constant 0 : i32
    %c0_i32_1 = arith.constant 0 : i32
    return %c0_i32, %c0_i32_0 : i32, i32
  }
  func.func @transform_2(%arg0: i32) -> (i32, i32) {
    %c0_i32 = arith.constant 0 : i32
    %c0_i32_0 = arith.constant 0 : i32
    %c0_i32_1 = arith.constant 0 : i32
    return %c0_i32, %c0_i32_0 : i32, i32
  }
  func.func @transform_3(%arg0: i32) -> (i32, i32) {
    %c0_i32 = arith.constant 0 : i32
    %c0_i32_0 = arith.constant 0 : i32
    %c0_i32_1 = arith.constant 0 : i32
    return %c0_i32, %c0_i32_0 : i32, i32
  }
  func.func @transform_4(%arg0: i32) -> (i32, i32) {
    %c0_i32 = arith.constant 0 : i32
    %c0_i32_0 = arith.constant 0 : i32
    return %arg0, %c0_i32 : i32, i32
  }
}

</mosaic_0001>

<llo_original>
// kernel: tpu_custom_call.1
$region0: #{tpu_custom_call.1}
  #allocation0 [shape = 'u32[]', space=smem, size = 0x4, offset = 0x4, fixed_abs, tag = 'smem constant byte address 0x4 - core index']
  #allocation1 [shape = 'u32[72,128]{1,0:T(1,128)}', space=vmem, size = 0x9000, scoped, tag = 'internal scratch']
  %s0 = inlined_call_operand.vmem [shape: f32[8,1], index: 0, kind: input, shape index: {}]
  %s1 = inlined_call_operand.vmem [shape: f32[1,256], index: 1, kind: input, shape index: {}]
  %s2 = inlined_call_operand.hbm [shape: bf16[512,512], index: 2, kind: input, shape index: {}]
  %s3 = inlined_call_operand.vmem [shape: f32[1,512], index: 3, kind: input, shape index: {}]
  %s4 = inlined_call_operand.hbm [shape: f32[8,512], index: 4, kind: output, shape index: {}]
  %s5 = sld [smem:[#allocation0]]
  $region30: #{tpu_custom_call.1} parent=0
    _
  %s7 = ssub.s32 1, %s5
  %s8 = scalar_select 0, %s7, %s5
  $region1: #{tpu_custom_call.1} parent=0
    #allocation2 [shape = 'u8[524288]{0}', space=vmem, size = 0x80000, scoped, tag = 'input window, operand 2, single buffered']
    #allocation3 [shape = 's32[1]{0}', space=sflag, size = 0x4, scoped, tag = 'scoped memory for tpu_custom_call.1']
    #allocation4 [shape = 's32[1]{0}', space=sflag, size = 0x4, scoped, tag = 'scoped memory for tpu_custom_call.1']
    #allocation5 [shape = 'u8[16384]{0}', space=vmem, size = 0x4000, scoped, tag = 'output window, operand 0, single buffered']
    %9 = vsyncpa [#allocation3], 0
    %10 = vsyncpa [#allocation4], 0
    // Predicated region
    $region2: #{tpu_custom_call.1} parent=1 // pred_check
      _
    $region3: #{tpu_custom_call.1} parent=1 // pred_check_branch
      %12 = sbr.rel (0) target = $region5
    $region4: #{tpu_custom_call.1} parent=1 // pred_region
      _
    $region5: #{tpu_custom_call.1} parent=1 // pred_fallthru
      _
    // Predicated region
    $region6: #{tpu_custom_call.1} parent=1 // pred_check
      _
    $region7: #{tpu_custom_call.1} parent=1 // pred_check_branch
      %14 = sbr.rel (0) target = $region9
    $region8: #{tpu_custom_call.1} parent=1 // pred_region
      _
    $region9: #{tpu_custom_call.1} parent=1 // pred_fallthru
      _
    // Predicated region
    $region10: #{tpu_custom_call.1} parent=1 // pred_check
      _
    $region11: #{tpu_custom_call.1} parent=1 // pred_check_branch
      %16 = sbr.rel (0) target = $region13
    $region12: #{tpu_custom_call.1} parent=1 // pred_region
      %18 = vsyncadd [#allocation3], 0
      %s19 = sshll.u32 %s2, 4
      %s20 = int_to_ptr.hbm [resolvable:$true] %s19
      %s21 = sshll.u32 [#allocation2], 4
      %s22 = int_to_ptr.vmem [resolvable:$true] %s21
      %27 = dma.hbm_to_vmem [thread:$0]  %s20, 16384, %s22, [#allocation3], 256, 256, 16
    $region13: #{tpu_custom_call.1} parent=1 // pred_fallthru
      _
    // Predicated region
    $region14: #{tpu_custom_call.1} parent=1 // pred_check
      _
    $region15: #{tpu_custom_call.1} parent=1 // pred_check_branch
      %29 = sbr.rel (0) target = $region17
    $region16: #{tpu_custom_call.1} parent=1 // pred_region
      _
    $region17: #{tpu_custom_call.1} parent=1 // pred_fallthru
      _
    // Predicated region
    $region18: #{tpu_custom_call.1} parent=1 // pred_check
      _
    $region19: #{tpu_custom_call.1} parent=1 // pred_check_branch
      %31 = sbr.rel (0) target = $region21
    $region20: #{tpu_custom_call.1} parent=1 // pred_region
      %33 = dma.done [#allocation3], 16384
    $region21: #{tpu_custom_call.1} parent=1 // pred_fallthru
      _
    %v34 = vld [vmem:[%s0] sm:$0xff]
    %v35 = vld [vmem:[%s1] sm:$0x3]
    %37 = vset.pattern.permute.xlu0 0
    %38 = vperm.xlu0 %37, %v34
    %v39 = vpop.permute.xlu0 %38
    %v42 = vperm.slane %v35, 0
    %v43 = vperm.slane %v35, 1
    %v46 = vmul.f32 %v39, %v42
    %v47 = vmul.f32 %v39, %v43
    %v48 = vand.u32 2147483647, %v46
    %vm49 = vcmp.le.f32.partialorder %v48, 0.7853982
    %vm50 = vcmp.lt.s32.totalorder %v46, 0
    %v51 = vand.u32 %v46, 2139095040
    %v52 = vshrl.u32 %v51, 23
    %v53 = vsub.s32 %v52, 127
    %v54 = vand.u32 2147483647, %v46
    %v55 = vand.u32 %v54, 8388607
    %v56 = vor.u32 %v55, 8388608
    %v57 = vsub.s32 0, %v56
    %v58 = vadd.s32 %v53, 1
    %vm59 = vcmp.gt.s32.totalorder %v58, 0
    %v60 = vsel %vm59, %v58, 0
    %v61 = vshrl.u32 %v60, 5
    %v62 = vand.u32 %v60, 31
    %v63 = vsub.s32 32, %v62
    %v64 = vshrl.u32 683565275, %v63
    %v65 = vshll.u32 683565275, %v62
    %v66 = vshrl.u32 2475754826, %v63
    %v67 = vor.u32 %v65, %v66
    %v68 = vshll.u32 2475754826, %v62
    %v69 = vshrl.u32 2131351028, %v63
    %v70 = vor.u32 %v68, %v69
    %v71 = vshll.u32 2131351028, %v62
    %v72 = vshrl.u32 2102212464, %v63
    %v73 = vor.u32 %v71, %v72
    %v74 = vshll.u32 2102212464, %v62
    %v75 = vshrl.u32 920167782, %v63
    %v76 = vor.u32 %v74, %v75
    %v77 = vshll.u32 920167782, %v62
    %v78 = vshrl.u32 1326507024, %v63
    %v79 = vor.u32 %v77, %v78
    %vm80 = vcmp.lt.s32.totalorder %v61, 1
    %vm81 = vcmp.lt.s32.totalorder %v61, 2
    %vm82 = vcmp.lt.s32.totalorder %v61, 3
    %vm83 = vcmp.lt.s32.totalorder %v61, 4
    %v84 = vsel %vm80, %v64, %v67
    %v85 = vsel %vm83, %v73, 2102212464
    %v86 = vsel %vm82, %v70, %v85
    %v87 = vsel %vm81, %v84, %v86
    %v88 = vsel %vm80, %v67, %v70
    %v89 = vsel %vm83, %v76, 920167782
    %v90 = vsel %vm82, %v73, %v89
    %v91 = vsel %vm81, %v88, %v90
    %v92 = vsel %vm80, %v70, %v73
    %v93 = vsel %vm83, %v79, 1326507024
    %v94 = vsel %vm82, %v76, %v93
    %v95 = vsel %vm81, %v92, %v94
    %v96 = vshll.u32 %v56, 8
    %v97 = vand.u32 %v96, 65535
    %v98 = vshrl.u32 %v96, 16
    %v99 = vand.u32 %v95, 65535
    %v100 = vshrl.u32 %v95, 16
    %v101 = vmul.u32 %v97, %v99
    %v102 = vmul.u32 %v97, %v100
    %v103 = vmul.u32 %v98, %v99
    %v104 = vmul.u32 %v98, %v100
    %v105 = vshll.u32 %v102, 16
    %v106 = vshrl.u32 %v102, 16
    %v107 = vshll.u32 %v103, 16
    %v108 = vshrl.u32 %v103, 16
    %vm109 = vc.u32 %v101, %v105
    %v110 = vsel %vm109, 1, 0
    %v111 = vadd.s32 %v101, %v105
    %v112 = vadd.s32 %v104, %v110
    %vm113 = vc.u32 %v111, %v107
    %v114 = vsel %vm113, 1, 0
    %v115 = vadd.s32 %v111, %v107
    %v116 = vadd.s32 %v112, %v114
    %v117 = vadd.s32 %v116, %v106
    %v118 = vadd.s32 %v117, %v108
    %v119 = vand.u32 %v96, 65535
    %v120 = vshrl.u32 %v96, 16
    %v121 = vand.u32 %v91, 65535
    %v122 = vshrl.u32 %v91, 16
    %v123 = vmul.u32 %v119, %v121
    %v124 = vmul.u32 %v119, %v122
    %v125 = vmul.u32 %v120, %v121
    %v126 = vmul.u32 %v120, %v122
    %v127 = vshll.u32 %v124, 16
    %v128 = vshrl.u32 %v124, 16
    %v129 = vshll.u32 %v125, 16
    %v130 = vshrl.u32 %v125, 16
    %vm131 = vc.u32 %v123, %v127
    %v132 = vsel %vm131, 1, 0
    %v133 = vadd.s32 %v123, %v127
    %v134 = vadd.s32 %v126, %v132
    %vm135 = vc.u32 %v133, %v129
    %v136 = vsel %vm135, 1, 0
    %v137 = vadd.s32 %v133, %v129
    %v138 = vadd.s32 %v134, %v136
    %v139 = vadd.s32 %v138, %v128
    %v140 = vadd.s32 %v139, %v130
    %v141 = vmul.u32 %v96, %v87
    %v142 = vadd.s32 %v118, %v137
    %vm143 = vc.u32 %v118, %v137
    %v144 = vadd.s32 %v140, 1
    %v145 = vsel %vm143, %v144, %v140
    %v146 = vadd.s32 %v141, %v145
    %v147 = vadd.s32 %v146, 536870912
    %v148 = vshrl.u32 %v147, 30
    %v149 = vshll.u32 %v148, 30
    %v150 = vsub.s32 %v146, %v149
    %vm151 = vcmp.lt.s32.totalorder %v150, 0
    %v152 = vsub.s32 0, %v150
    %v153 = vsel %vm151, %v152, %v150
    %v154 = vclz %v153
    %v155 = vsub.s32 %v154, 2
    %vm156 = vcmp.gt.s32.totalorder 0, %v155
    %v157 = vsel %vm156, 0, %v155
    %v158 = vsub.s32 32, %v157
    %v159 = vshll.u32 %v150, %v157
    %v160 = vshrl.u32 %v142, %v158
    %v161 = vor.u32 %v159, %v160
    %v162 = vsub.s32 4294967266, %v157
    %v163 = vadd.s32 %v162, 127
    %v164 = vshll.u32 %v163, 23
    %v165 = vor.u32 4788187, %v164
    %v166 = vand.u32 2147483647, %v165
    %v168 = vcvt.s32.f32 %v161
    %v169 = vmul.f32 %v168, %v166
    %v170 = vxor.u32 %v169, 2147483648
    %v171 = vsel %vm50, %v170, %v169
    %v172 = vsub.s32 4, %v148
    %v173 = vsel %vm50, %v172, %v148
    %v174 = vsel %vm49, %v46, %v171
    %v175 = vsel %vm49, 0, %v173
    %v176 = vmul.f32 %v174, %v174
    %v177 = vmul.f32 %v176, -0.001358992
    %v178 = vadd.f32 %v177, 0.041655596
    %v179 = vmul.f32 %v176, %v178
    %v180 = vadd.f32 %v179, -0.4999988
    %v181 = vmul.f32 %v176, %v180
    %v182 = vadd.f32 1.0, %v181
    %v183 = vmul.f32 %v174, %v174
    %v184 = vmul.f32 %v183, -0.00019511016
    %v185 = vadd.f32 %v184, 0.008332121
    %v186 = vmul.f32 %v183, %v185
    %v187 = vadd.f32 %v186, -0.16666654
    %v188 = vmul.f32 %v183, %v187
    %v189 = vadd.f32 %v188, 1.0
    %v190 = vmul.f32 %v189, %v174
    %vm191 = vweird.f32 %v46
    %v192 = vadd.s32 %v175, 3
    %v193 = vand.u32 %v192, 3
    %vm194 = vcmp.lt.s32.totalorder %v193, 2
    %vm195 = vcmp.eq.s32.totalorder %v193, 0
    %v196 = vxor.u32 %v190, 2147483648
    %v197 = vsel %vm195, %v182, %v196
    %vm198 = vcmp.eq.s32.totalorder %v193, 2
    %v199 = vxor.u32 %v182, 2147483648
    %v200 = vsel %vm198, %v199, %v190
    %v201 = vsel %vm194, %v197, %v200
    %v202 = vsel %vm191, nan, %v201
    %v203 = vand.u32 2147483647, %v47
    %vm204 = vcmp.le.f32.partialorder %v203, 0.7853982
    %vm205 = vcmp.lt.s32.totalorder %v47, 0
    %v206 = vand.u32 %v47, 2139095040
    %v207 = vshrl.u32 %v206, 23
    %v208 = vsub.s32 %v207, 127
    %v209 = vand.u32 2147483647, %v47
    %v210 = vand.u32 %v209, 8388607
    %v211 = vor.u32 %v210, 8388608
    %v212 = vsub.s32 0, %v211
    %v213 = vadd.s32 %v208, 1
    %vm214 = vcmp.gt.s32.totalorder %v213, 0
    %v215 = vsel %vm214, %v213, 0
    %v216 = vshrl.u32 %v215, 5
    %v217 = vand.u32 %v215, 31
    %v218 = vsub.s32 32, %v217
    %v219 = vshrl.u32 683565275, %v218
    %v220 = vshll.u32 683565275, %v217
    %v221 = vshrl.u32 2475754826, %v218
    %v222 = vor.u32 %v220, %v221
    %v223 = vshll.u32 2475754826, %v217
    %v224 = vshrl.u32 2131351028, %v218
    %v225 = vor.u32 %v223, %v224
    %v226 = vshll.u32 2131351028, %v217
    %v227 = vshrl.u32 2102212464, %v218
    %v228 = vor.u32 %v226, %v227
    %v229 = vshll.u32 2102212464, %v217
    %v230 = vshrl.u32 920167782, %v218
    %v231 = vor.u32 %v229, %v230
    %v232 = vshll.u32 920167782, %v217
    %v233 = vshrl.u32 1326507024, %v218
    %v234 = vor.u32 %v232, %v233
    %vm235 = vcmp.lt.s32.totalorder %v216, 1
    %vm236 = vcmp.lt.s32.totalorder %v216, 2
    %vm237 = vcmp.lt.s32.totalorder %v216, 3
    %vm238 = vcmp.lt.s32.totalorder %v216, 4
    %v239 = vsel %vm235, %v219, %v222
    %v240 = vsel %vm238, %v228, 2102212464
    %v241 = vsel %vm237, %v225, %v240
    %v242 = vsel %vm236, %v239, %v241
    %v243 = vsel %vm235, %v222, %v225
    %v244 = vsel %vm238, %v231, 920167782
    %v245 = vsel %vm237, %v228, %v244
    %v246 = vsel %vm236, %v243, %v245
    %v247 = vsel %vm235, %v225, %v228
    %v248 = vsel %vm238, %v234, 1326507024
    %v249 = vsel %vm237, %v231, %v248
    %v250 = vsel %vm236, %v247, %v249
    %v251 = vshll.u32 %v211, 8
    %v252 = vand.u32 %v251, 65535
    %v253 = vshrl.u32 %v251, 16
    %v254 = vand.u32 %v250, 65535
    %v255 = vshrl.u32 %v250, 16
    %v256 = vmul.u32 %v252, %v254
    %v257 = vmul.u32 %v252, %v255
    %v258 = vmul.u32 %v253, %v254
    %v259 = vmul.u32 %v253, %v255
    %v260 = vshll.u32 %v257, 16
    %v261 = vshrl.u32 %v257, 16
    %v262 = vshll.u32 %v258, 16
    %v263 = vshrl.u32 %v258, 16
    %vm264 = vc.u32 %v256, %v260
    %v265 = vsel %vm264, 1, 0
    %v266 = vadd.s32 %v256, %v260
    %v267 = vadd.s32 %v259, %v265
    %vm268 = vc.u32 %v266, %v262
    %v269 = vsel %vm268, 1, 0
    %v270 = vadd.s32 %v266, %v262
    %v271 = vadd.s32 %v267, %v269
    %v272 = vadd.s32 %v271, %v261
    %v273 = vadd.s32 %v272, %v263
    %v274 = vand.u32 %v251, 65535
    %v275 = vshrl.u32 %v251, 16
    %v276 = vand.u32 %v246, 65535
    %v277 = vshrl.u32 %v246, 16
    %v278 = vmul.u32 %v274, %v276
    %v279 = vmul.u32 %v274, %v277
    %v280 = vmul.u32 %v275, %v276
    %v281 = vmul.u32 %v275, %v277
    %v282 = vshll.u32 %v279, 16
    %v283 = vshrl.u32 %v279, 16
    %v284 = vshll.u32 %v280, 16
    %v285 = vshrl.u32 %v280, 16
    %vm286 = vc.u32 %v278, %v282
    %v287 = vsel %vm286, 1, 0
    %v288 = vadd.s32 %v278, %v282
    %v289 = vadd.s32 %v281, %v287
    %vm290 = vc.u32 %v288, %v284
    %v291 = vsel %vm290, 1, 0
    %v292 = vadd.s32 %v288, %v284
    %v293 = vadd.s32 %v289, %v291
    %v294 = vadd.s32 %v293, %v283
    %v295 = vadd.s32 %v294, %v285
    %v296 = vmul.u32 %v251, %v242
    %v297 = vadd.s32 %v273, %v292
    %vm298 = vc.u32 %v273, %v292
    %v299 = vadd.s32 %v295, 1
    %v300 = vsel %vm298, %v299, %v295
    %v301 = vadd.s32 %v296, %v300
    %v302 = vadd.s32 %v301, 536870912
    %v303 = vshrl.u32 %v302, 30
    %v304 = vshll.u32 %v303, 30
    %v305 = vsub.s32 %v301, %v304
    %vm306 = vcmp.lt.s32.totalorder %v305, 0
    %v307 = vsub.s32 0, %v305
    %v308 = vsel %vm306, %v307, %v305
    %v309 = vclz %v308
    %v310 = vsub.s32 %v309, 2
    %vm311 = vcmp.gt.s32.totalorder 0, %v310
    %v312 = vsel %vm311, 0, %v310
    %v313 = vsub.s32 32, %v312
    %v314 = vshll.u32 %v305, %v312
    %v315 = vshrl.u32 %v297, %v313
    %v316 = vor.u32 %v314, %v315
    %v317 = vsub.s32 4294967266, %v312
    %v318 = vadd.s32 %v317, 127
    %v319 = vshll.u32 %v318, 23
    %v320 = vor.u32 4788187, %v319
    %v321 = vand.u32 2147483647, %v320
    %v323 = vcvt.s32.f32 %v316
    %v324 = vmul.f32 %v323, %v321
    %v325 = vxor.u32 %v324, 2147483648
    %v326 = vsel %vm205, %v325, %v324
    %v327 = vsub.s32 4, %v303
    %v328 = vsel %vm205, %v327, %v303
    %v329 = vsel %vm204, %v47, %v326
    %v330 = vsel %vm204, 0, %v328
    %v331 = vmul.f32 %v329, %v329
    %v332 = vmul.f32 %v331, -0.001358992
    %v333 = vadd.f32 %v332, 0.041655596
    %v334 = vmul.f32 %v331, %v333
    %v335 = vadd.f32 %v334, -0.4999988
    %v336 = vmul.f32 %v331, %v335
    %v337 = vadd.f32 1.0, %v336
    %v338 = vmul.f32 %v329, %v329
    %v339 = vmul.f32 %v338, -0.00019511016
    %v340 = vadd.f32 %v339, 0.008332121
    %v341 = vmul.f32 %v338, %v340
    %v342 = vadd.f32 %v341, -0.16666654
    %v343 = vmul.f32 %v338, %v342
    %v344 = vadd.f32 %v343, 1.0
    %v345 = vmul.f32 %v344, %v329
    %vm346 = vweird.f32 %v47
    %v347 = vadd.s32 %v330, 3
    %v348 = vand.u32 %v347, 3
    %vm349 = vcmp.lt.s32.totalorder %v348, 2
    %vm350 = vcmp.eq.s32.totalorder %v348, 0
    %v351 = vxor.u32 %v345, 2147483648
    %v352 = vsel %vm350, %v337, %v351
    %vm353 = vcmp.eq.s32.totalorder %v348, 2
    %v354 = vxor.u32 %v337, 2147483648
    %v355 = vsel %vm353, %v354, %v345
    %v356 = vsel %vm349, %v352, %v355
    %v357 = vsel %vm346, nan, %v356
    %v358 = vpack.c.bf16 %v202, %v202
    %v359 = vpack.c.bf16 %v357, %v357
    %v360 = vand.u32 2147483647, %v46
    %vm361 = vcmp.le.f32.partialorder %v360, 0.7853982
    %vm362 = vcmp.lt.s32.totalorder %v46, 0
    %v363 = vand.u32 %v46, 2139095040
    %v364 = vshrl.u32 %v363, 23
    %v365 = vsub.s32 %v364, 127
    %v366 = vand.u32 2147483647, %v46
    %v367 = vand.u32 %v366, 8388607
    %v368 = vor.u32 %v367, 8388608
    %v369 = vsub.s32 0, %v368
    %v370 = vadd.s32 %v365, 1
    %vm371 = vcmp.gt.s32.totalorder %v370, 0
    %v372 = vsel %vm371, %v370, 0
    %v373 = vshrl.u32 %v372, 5
    %v374 = vand.u32 %v372, 31
    %v375 = vsub.s32 32, %v374
    %v376 = vshrl.u32 683565275, %v375
    %v377 = vshll.u32 683565275, %v374
    %v378 = vshrl.u32 2475754826, %v375
    %v379 = vor.u32 %v377, %v378
    %v380 = vshll.u32 2475754826, %v374
    %v381 = vshrl.u32 2131351028, %v375
    %v382 = vor.u32 %v380, %v381
    %v383 = vshll.u32 2131351028, %v374
    %v384 = vshrl.u32 2102212464, %v375
    %v385 = vor.u32 %v383, %v384
    %v386 = vshll.u32 2102212464, %v374
    %v387 = vshrl.u32 920167782, %v375
    %v388 = vor.u32 %v386, %v387
    %v389 = vshll.u32 920167782, %v374
    %v390 = vshrl.u32 1326507024, %v375
    %v391 = vor.u32 %v389, %v390
    %vm392 = vcmp.lt.s32.totalorder %v373, 1
    %vm393 = vcmp.lt.s32.totalorder %v373, 2
    %vm394 = vcmp.lt.s32.totalorder %v373, 3
    %vm395 = vcmp.lt.s32.totalorder %v373, 4
    %v396 = vsel %vm392, %v376, %v379
    %v397 = vsel %vm395, %v385, 2102212464
    %v398 = vsel %vm394, %v382, %v397
    %v399 = vsel %vm393, %v396, %v398
    %v400 = vsel %vm392, %v379, %v382
    %v401 = vsel %vm395, %v388, 920167782
    %v402 = vsel %vm394, %v385, %v401
    %v403 = vsel %vm393, %v400, %v402
    %v404 = vsel %vm392, %v382, %v385
    %v405 = vsel %vm395, %v391, 1326507024
    %v406 = vsel %vm394, %v388, %v405
    %v407 = vsel %vm393, %v404, %v406
    %v408 = vshll.u32 %v368, 8
    %v409 = vand.u32 %v408, 65535
    %v410 = vshrl.u32 %v408, 16
    %v411 = vand.u32 %v407, 65535
    %v412 = vshrl.u32 %v407, 16
    %v413 = vmul.u32 %v409, %v411
    %v414 = vmul.u32 %v409, %v412
    %v415 = vmul.u32 %v410, %v411
    %v416 = vmul.u32 %v410, %v412
    %v417 = vshll.u32 %v414, 16
    %v418 = vshrl.u32 %v414, 16
    %v419 = vshll.u32 %v415, 16
    %v420 = vshrl.u32 %v415, 16
    %vm421 = vc.u32 %v413, %v417
    %v422 = vsel %vm421, 1, 0
    %v423 = vadd.s32 %v413, %v417
    %v424 = vadd.s32 %v416, %v422
    %vm425 = vc.u32 %v423, %v419
    %v426 = vsel %vm425, 1, 0
    %v427 = vadd.s32 %v423, %v419
    %v428 = vadd.s32 %v424, %v426
    %v429 = vadd.s32 %v428, %v418
    %v430 = vadd.s32 %v429, %v420
    %v431 = vand.u32 %v408, 65535
    %v432 = vshrl.u32 %v408, 16
    %v433 = vand.u32 %v403, 65535
    %v434 = vshrl.u32 %v403, 16
    %v435 = vmul.u32 %v431, %v433
    %v436 = vmul.u32 %v431, %v434
    %v437 = vmul.u32 %v432, %v433
    %v438 = vmul.u32 %v432, %v434
    %v439 = vshll.u32 %v436, 16
    %v440 = vshrl.u32 %v436, 16
    %v441 = vshll.u32 %v437, 16
    %v442 = vshrl.u32 %v437, 16
    %vm443 = vc.u32 %v435, %v439
    %v444 = vsel %vm443, 1, 0
    %v445 = vadd.s32 %v435, %v439
    %v446 = vadd.s32 %v438, %v444
    %vm447 = vc.u32 %v445, %v441
    %v448 = vsel %vm447, 1, 0
    %v449 = vadd.s32 %v445, %v441
    %v450 = vadd.s32 %v446, %v448
    %v451 = vadd.s32 %v450, %v440
    %v452 = vadd.s32 %v451, %v442
    %v453 = vmul.u32 %v408, %v399
    %v454 = vadd.s32 %v430, %v449
    %vm455 = vc.u32 %v430, %v449
    %v456 = vadd.s32 %v452, 1
    %v457 = vsel %vm455, %v456, %v452
    %v458 = vadd.s32 %v453, %v457
    %v459 = vadd.s32 %v458, 536870912
    %v460 = vshrl.u32 %v459, 30
    %v461 = vshll.u32 %v460, 30
    %v462 = vsub.s32 %v458, %v461
    %vm463 = vcmp.lt.s32.totalorder %v462, 0
    %v464 = vsub.s32 0, %v462
    %v465 = vsel %vm463, %v464, %v462
    %v466 = vclz %v465
    %v467 = vsub.s32 %v466, 2
    %vm468 = vcmp.gt.s32.totalorder 0, %v467
    %v469 = vsel %vm468, 0, %v467
    %v470 = vsub.s32 32, %v469
    %v471 = vshll.u32 %v462, %v469
    %v472 = vshrl.u32 %v454, %v470
    %v473 = vor.u32 %v471, %v472
    %v474 = vsub.s32 4294967266, %v469
    %v475 = vadd.s32 %v474, 127
    %v476 = vshll.u32 %v475, 23
    %v477 = vor.u32 4788187, %v476
    %v478 = vand.u32 2147483647, %v477
    %v480 = vcvt.s32.f32 %v473
    %v481 = vmul.f32 %v480, %v478
    %v482 = vxor.u32 %v481, 2147483648
    %v483 = vsel %vm362, %v482, %v481
    %v484 = vsub.s32 4, %v460
    %v485 = vsel %vm362, %v484, %v460
    %v486 = vsel %vm361, %v46, %v483
    %v487 = vsel %vm361, 0, %v485
    %v488 = vmul.f32 %v486, %v486
    %v489 = vmul.f32 %v488, -0.001358992
    %v490 = vadd.f32 %v489, 0.041655596
    %v491 = vmul.f32 %v488, %v490
    %v492 = vadd.f32 %v491, -0.4999988
    %v493 = vmul.f32 %v488, %v492
    %v494 = vadd.f32 1.0, %v493
    %v495 = vmul.f32 %v486, %v486
    %v496 = vmul.f32 %v495, -0.00019511016
    %v497 = vadd.f32 %v496, 0.008332121
    %v498 = vmul.f32 %v495, %v497
    %v499 = vadd.f32 %v498, -0.16666654
    %v500 = vmul.f32 %v495, %v499
    %v501 = vadd.f32 %v500, 1.0
    %v502 = vmul.f32 %v501, %v486
    %vm503 = vweird.f32 %v46
    %v504 = vand.u32 %v487, 3
    %vm505 = vcmp.lt.s32.totalorder %v504, 2
    %vm506 = vcmp.eq.s32.totalorder %v504, 0
    %v507 = vxor.u32 %v502, 2147483648
    %v508 = vsel %vm506, %v494, %v507
    %vm509 = vcmp.eq.s32.totalorder %v504, 2
    %v510 = vxor.u32 %v494, 2147483648
    %v511 = vsel %vm509, %v510, %v502
    %v512 = vsel %vm505, %v508, %v511
    %v513 = vsel %vm503, nan, %v512
    %v514 = vand.u32 2147483647, %v47
    %vm515 = vcmp.le.f32.partialorder %v514, 0.7853982
    %vm516 = vcmp.lt.s32.totalorder %v47, 0
    %v517 = vand.u32 %v47, 2139095040
    %v518 = vshrl.u32 %v517, 23
    %v519 = vsub.s32 %v518, 127
    %v520 = vand.u32 2147483647, %v47
    %v521 = vand.u32 %v520, 8388607
    %v522 = vor.u32 %v521, 8388608
    %v523 = vsub.s32 0, %v522
    %v524 = vadd.s32 %v519, 1
    %vm525 = vcmp.gt.s32.totalorder %v524, 0
    %v526 = vsel %vm525, %v524, 0
    %v527 = vshrl.u32 %v526, 5
    %v528 = vand.u32 %v526, 31
    %v529 = vsub.s32 32, %v528
    %v530 = vshrl.u32 683565275, %v529
    %v531 = vshll.u32 683565275, %v528
    %v532 = vshrl.u32 2475754826, %v529
    %v533 = vor.u32 %v531, %v532
    %v534 = vshll.u32 2475754826, %v528
    %v535 = vshrl.u32 2131351028, %v529
    %v536 = vor.u32 %v534, %v535
    %v537 = vshll.u32 2131351028, %v528
    %v538 = vshrl.u32 2102212464, %v529
    %v539 = vor.u32 %v537, %v538
    %v540 = vshll.u32 2102212464, %v528
    %v541 = vshrl.u32 920167782, %v529
    %v542 = vor.u32 %v540, %v541
    %v543 = vshll.u32 920167782, %v528
    %v544 = vshrl.u32 1326507024, %v529
    %v545 = vor.u32 %v543, %v544
    %vm546 = vcmp.lt.s32.totalorder %v527, 1
    %vm547 = vcmp.lt.s32.totalorder %v527, 2
    %vm548 = vcmp.lt.s32.totalorder %v527, 3
    %vm549 = vcmp.lt.s32.totalorder %v527, 4
    %v550 = vsel %vm546, %v530, %v533
    %v551 = vsel %vm549, %v539, 2102212464
    %v552 = vsel %vm548, %v536, %v551
    %v553 = vsel %vm547, %v550, %v552
    %v554 = vsel %vm546, %v533, %v536
    %v555 = vsel %vm549, %v542, 920167782
    %v556 = vsel %vm548, %v539, %v555
    %v557 = vsel %vm547, %v554, %v556
    %v558 = vsel %vm546, %v536, %v539
    %v559 = vsel %vm549, %v545, 1326507024
    %v560 = vsel %vm548, %v542, %v559
    %v561 = vsel %vm547, %v558, %v560
    %v562 = vshll.u32 %v522, 8
    %v563 = vand.u32 %v562, 65535
    %v564 = vshrl.u32 %v562, 16
    %v565 = vand.u32 %v561, 65535
    %v566 = vshrl.u32 %v561, 16
    %v567 = vmul.u32 %v563, %v565
    %v568 = vmul.u32 %v563, %v566
    %v569 = vmul.u32 %v564, %v565
    %v570 = vmul.u32 %v564, %v566
    %v571 = vshll.u32 %v568, 16
    %v572 = vshrl.u32 %v568, 16
    %v573 = vshll.u32 %v569, 16
    %v574 = vshrl.u32 %v569, 16
    %vm575 = vc.u32 %v567, %v571
    %v576 = vsel %vm575, 1, 0
    %v577 = vadd.s32 %v567, %v571
    %v578 = vadd.s32 %v570, %v576
    %vm579 = vc.u32 %v577, %v573
    %v580 = vsel %vm579, 1, 0
    %v581 = vadd.s32 %v577, %v573
    %v582 = vadd.s32 %v578, %v580
    %v583 = vadd.s32 %v582, %v572
    %v584 = vadd.s32 %v583, %v574
    %v585 = vand.u32 %v562, 65535
    %v586 = vshrl.u32 %v562, 16
    %v587 = vand.u32 %v557, 65535
    %v588 = vshrl.u32 %v557, 16
    %v589 = vmul.u32 %v585, %v587
    %v590 = vmul.u32 %v585, %v588
    %v591 = vmul.u32 %v586, %v587
    %v592 = vmul.u32 %v586, %v588
    %v593 = vshll.u32 %v590, 16
    %v594 = vshrl.u32 %v590, 16
    %v595 = vshll.u32 %v591, 16
    %v596 = vshrl.u32 %v591, 16
    %vm597 = vc.u32 %v589, %v593
    %v598 = vsel %vm597, 1, 0
    %v599 = vadd.s32 %v589, %v593
    %v600 = vadd.s32 %v592, %v598
    %vm601 = vc.u32 %v599, %v595
    %v602 = vsel %vm601, 1, 0
    %v603 = vadd.s32 %v599, %v595
    %v604 = vadd.s32 %v600, %v602
    %v605 = vadd.s32 %v604, %v594
    %v606 = vadd.s32 %v605, %v596
    %v607 = vmul.u32 %v562, %v553
    %v608 = vadd.s32 %v584, %v603
    %vm609 = vc.u32 %v584, %v603
    %v610 = vadd.s32 %v606, 1
    %v611 = vsel %vm609, %v610, %v606
    %v612 = vadd.s32 %v607, %v611
    %v613 = vadd.s32 %v612, 536870912
    %v614 = vshrl.u32 %v613, 30
    %v615 = vshll.u32 %v614, 30
    %v616 = vsub.s32 %v612, %v615
    %vm617 = vcmp.lt.s32.totalorder %v616, 0
    %v618 = vsub.s32 0, %v616
    %v619 = vsel %vm617, %v618, %v616
    %v620 = vclz %v619
    %v621 = vsub.s32 %v620, 2
    %vm622 = vcmp.gt.s32.totalorder 0, %v621
    %v623 = vsel %vm622, 0, %v621
    %v624 = vsub.s32 32, %v623
    %v625 = vshll.u32 %v616, %v623
    %v626 = vshrl.u32 %v608, %v624
    %v627 = vor.u32 %v625, %v626
    %v628 = vsub.s32 4294967266, %v623
    %v629 = vadd.s32 %v628, 127
    %v630 = vshll.u32 %v629, 23
    %v631 = vor.u32 4788187, %v630
    %v632 = vand.u32 2147483647, %v631
    %v634 = vcvt.s32.f32 %v627
    %v635 = vmul.f32 %v634, %v632
    %v636 = vxor.u32 %v635, 2147483648
    %v637 = vsel %vm516, %v636, %v635
    %v638 = vsub.s32 4, %v614
    %v639 = vsel %vm516, %v638, %v614
    %v640 = vsel %vm515, %v47, %v637
    %v641 = vsel %vm515, 0, %v639
    %v642 = vmul.f32 %v640, %v640
    %v643 = vmul.f32 %v642, -0.001358992
    %v644 = vadd.f32 %v643, 0.041655596
    %v645 = vmul.f32 %v642, %v644
    %v646 = vadd.f32 %v645, -0.4999988
    %v647 = vmul.f32 %v642, %v646
    %v648 = vadd.f32 1.0, %v647
    %v649 = vmul.f32 %v640, %v640
    %v650 = vmul.f32 %v649, -0.00019511016
    %v651 = vadd.f32 %v650, 0.008332121
    %v652 = vmul.f32 %v649, %v651
    %v653 = vadd.f32 %v652, -0.16666654
    %v654 = vmul.f32 %v649, %v653
    %v655 = vadd.f32 %v654, 1.0
    %v656 = vmul.f32 %v655, %v640
    %vm657 = vweird.f32 %v47
    %v658 = vand.u32 %v641, 3
    %vm659 = vcmp.lt.s32.totalorder %v658, 2
    %vm660 = vcmp.eq.s32.totalorder %v658, 0
    %v661 = vxor.u32 %v656, 2147483648
    %v662 = vsel %vm660, %v648, %v661
    %vm663 = vcmp.eq.s32.totalorder %v658, 2
    %v664 = vxor.u32 %v648, 2147483648
    %v665 = vsel %vm663, %v664, %v656
    %v666 = vsel %vm659, %v662, %v665
    %v667 = vsel %vm657, nan, %v666
    %v668 = vpack.c.bf16 %v513, %v513
    %v669 = vpack.c.bf16 %v667, %v667
    %v670 = vld [vmem:[#allocation2] sm:$0xff]
    %v671 = vld [vmem:[#allocation2 + $0x8] sm:$0xff]
    %v672 = vld [vmem:[#allocation2 + $0x10] sm:$0xff]
    %v673 = vld [vmem:[#allocation2 + $0x18] sm:$0xff]
    %v674 = vld [vmem:[#allocation2 + $0x20] sm:$0xff]
    %v675 = vld [vmem:[#allocation2 + $0x28] sm:$0xff]
    %v676 = vld [vmem:[#allocation2 + $0x30] sm:$0xff]
    %v677 = vld [vmem:[#allocation2 + $0x38] sm:$0xff]
    %v678 = vld [vmem:[#allocation2 + $0x40] sm:$0xff]
    %v679 = vld [vmem:[#allocation2 + $0x48] sm:$0xff]
    %v680 = vld [vmem:[#allocation2 + $0x50] sm:$0xff]
    %v681 = vld [vmem:[#allocation2 + $0x58] sm:$0xff]
    %v682 = vld [vmem:[#allocation2 + $0x60] sm:$0xff]
    %v683 = vld [vmem:[#allocation2 + $0x68] sm:$0xff]
    %v684 = vld [vmem:[#allocation2 + $0x70] sm:$0xff]
    %v685 = vld [vmem:[#allocation2 + $0x78] sm:$0xff]
    %v686 = vld [vmem:[#allocation2 + $0x80] sm:$0xff]
    %v687 = vld [vmem:[#allocation2 + $0x88] sm:$0xff]
    %v688 = vld [vmem:[#allocation2 + $0x90] sm:$0xff]
    %v689 = vld [vmem:[#allocation2 + $0x98] sm:$0xff]
    %v690 = vld [vmem:[#allocation2 + $0xa0] sm:$0xff]
    %v691 = vld [vmem:[#allocation2 + $0xa8] sm:$0xff]
    %v692 = vld [vmem:[#allocation2 + $0xb0] sm:$0xff]
    %v693 = vld [vmem:[#allocation2 + $0xb8] sm:$0xff]
    %v694 = vld [vmem:[#allocation2 + $0xc0] sm:$0xff]
    %v695 = vld [vmem:[#allocation2 + $0xc8] sm:$0xff]
    %v696 = vld [vmem:[#allocation2 + $0xd0] sm:$0xff]
    %v697 = vld [vmem:[#allocation2 + $0xd8] sm:$0xff]
    %v698 = vld [vmem:[#allocation2 + $0xe0] sm:$0xff]
    %v699 = vld [vmem:[#allocation2 + $0xe8] sm:$0xff]
    %v700 = vld [vmem:[#allocation2 + $0xf0] sm:$0xff]
    %v701 = vld [vmem:[#allocation2 + $0xf8] sm:$0xff]
    %v702 = vld [vmem:[#allocation2 + $0x100] sm:$0xff]
    %v703 = vld [vmem:[#allocation2 + $0x108] sm:$0xff]
    %v704 = vld [vmem:[#allocation2 + $0x110] sm:$0xff]
    %v705 = vld [vmem:[#allocation2 + $0x118] sm:$0xff]
    %v706 = vld [vmem:[#allocation2 + $0x120] sm:$0xff]
    %v707 = vld [vmem:[#allocation2 + $0x128] sm:$0xff]
    %v708 = vld [vmem:[#allocation2 + $0x130] sm:$0xff]
    %v709 = vld [vmem:[#allocation2 + $0x138] sm:$0xff]
    %v710 = vld [vmem:[#allocation2 + $0x140] sm:$0xff]
    %v711 = vld [vmem:[#allocation2 + $0x148] sm:$0xff]
    %v712 = vld [vmem:[#allocation2 + $0x150] sm:$0xff]
    %v713 = vld [vmem:[#allocation2 + $0x158] sm:$0xff]
    %v714 = vld [vmem:[#allocation2 + $0x160] sm:$0xff]
    %v715 = vld [vmem:[#allocation2 + $0x168] sm:$0xff]
    %v716 = vld [vmem:[#allocation2 + $0x170] sm:$0xff]
    %v717 = vld [vmem:[#allocation2 + $0x178] sm:$0xff]
    %v718 = vld [vmem:[#allocation2 + $0x180] sm:$0xff]
    %v719 = vld [vmem:[#allocation2 + $0x188] sm:$0xff]
    %v720 = vld [vmem:[#allocation2 + $0x190] sm:$0xff]
    %v721 = vld [vmem:[#allocation2 + $0x198] sm:$0xff]
    %v722 = vld [vmem:[#allocation2 + $0x1a0] sm:$0xff]
    %v723 = vld [vmem:[#allocation2 + $0x1a8] sm:$0xff]
    %v724 = vld [vmem:[#allocation2 + $0x1b0] sm:$0xff]
    %v725 = vld [vmem:[#allocation2 + $0x1b8] sm:$0xff]
    %v726 = vld [vmem:[#allocation2 + $0x1c0] sm:$0xff]
    %v727 = vld [vmem:[#allocation2 + $0x1c8] sm:$0xff]
    %v728 = vld [vmem:[#allocation2 + $0x1d0] sm:$0xff]
    %v729 = vld [vmem:[#allocation2 + $0x1d8] sm:$0xff]
    %v730 = vld [vmem:[#allocation2 + $0x1e0] sm:$0xff]
    %v731 = vld [vmem:[#allocation2 + $0x1e8] sm:$0xff]
    %v732 = vld [vmem:[#allocation2 + $0x1f0] sm:$0xff]
    %v733 = vld [vmem:[#allocation2 + $0x1f8] sm:$0xff]
    %v734 = vld [vmem:[#allocation2 + $0x200] sm:$0xff]
    %v735 = vld [vmem:[#allocation2 + $0x208] sm:$0xff]
    %v736 = vld [vmem:[#allocation2 + $0x210] sm:$0xff]
    %v737 = vld [vmem:[#allocation2 + $0x218] sm:$0xff]
    %v738 = vld [vmem:[#allocation2 + $0x220] sm:$0xff]
    %v739 = vld [vmem:[#allocation2 + $0x228] sm:$0xff]
    %v740 = vld [vmem:[#allocation2 + $0x230] sm:$0xff]
    %v741 = vld [vmem:[#allocation2 + $0x238] sm:$0xff]
    %v742 = vld [vmem:[#allocation2 + $0x240] sm:$0xff]
    %v743 = vld [vmem:[#allocation2 + $0x248] sm:$0xff]
    %v744 = vld [vmem:[#allocation2 + $0x250] sm:$0xff]
    %v745 = vld [vmem:[#allocation2 + $0x258] sm:$0xff]
    %v746 = vld [vmem:[#allocation2 + $0x260] sm:$0xff]
    %v747 = vld [vmem:[#allocation2 + $0x268] sm:$0xff]
    %v748 = vld [vmem:[#allocation2 + $0x270] sm:$0xff]
    %v749 = vld [vmem:[#allocation2 + $0x278] sm:$0xff]
    %v750 = vld [vmem:[#allocation2 + $0x280] sm:$0xff]
    %v751 = vld [vmem:[#allocation2 + $0x288] sm:$0xff]
    %v752 = vld [vmem:[#allocation2 + $0x290] sm:$0xff]
    %v753 = vld [vmem:[#allocation2 + $0x298] sm:$0xff]
    %v754 = vld [vmem:[#allocation2 + $0x2a0] sm:$0xff]
    %v755 = vld [vmem:[#allocation2 + $0x2a8] sm:$0xff]
    %v756 = vld [vmem:[#allocation2 + $0x2b0] sm:$0xff]
    %v757 = vld [vmem:[#allocation2 + $0x2b8] sm:$0xff]
    %v758 = vld [vmem:[#allocation2 + $0x2c0] sm:$0xff]
    %v759 = vld [vmem:[#allocation2 + $0x2c8] sm:$0xff]
    %v760 = vld [vmem:[#allocation2 + $0x2d0] sm:$0xff]
    %v761 = vld [vmem:[#allocation2 + $0x2d8] sm:$0xff]
    %v762 = vld [vmem:[#allocation2 + $0x2e0] sm:$0xff]
    %v763 = vld [vmem:[#allocation2 + $0x2e8] sm:$0xff]
    %v764 = vld [vmem:[#allocation2 + $0x2f0] sm:$0xff]
    %v765 = vld [vmem:[#allocation2 + $0x2f8] sm:$0xff]
    %v766 = vld [vmem:[#allocation2 + $0x300] sm:$0xff]
    %v767 = vld [vmem:[#allocation2 + $0x308] sm:$0xff]
    %v768 = vld [vmem:[#allocation2 + $0x310] sm:$0xff]
    %v769 = vld [vmem:[#allocation2 + $0x318] sm:$0xff]
    %v770 = vld [vmem:[#allocation2 + $0x320] sm:$0xff]
    %v771 = vld [vmem:[#allocation2 + $0x328] sm:$0xff]
    %v772 = vld [vmem:[#allocation2 + $0x330] sm:$0xff]
    %v773 = vld [vmem:[#allocation2 + $0x338] sm:$0xff]
    %v774 = vld [vmem:[#allocation2 + $0x340] sm:$0xff]
    %v775 = vld [vmem:[#allocation2 + $0x348] sm:$0xff]
    %v776 = vld [vmem:[#allocation2 + $0x350] sm:$0xff]
    %v777 = vld [vmem:[#allocation2 + $0x358] sm:$0xff]
    %v778 = vld [vmem:[#allocation2 + $0x360] sm:$0xff]
    %v779 = vld [vmem:[#allocation2 + $0x368] sm:$0xff]
    %v780 = vld [vmem:[#allocation2 + $0x370] sm:$0xff]
    %v781 = vld [vmem:[#allocation2 + $0x378] sm:$0xff]
    %v782 = vld [vmem:[#allocation2 + $0x380] sm:$0xff]
    %v783 = vld [vmem:[#allocation2 + $0x388] sm:$0xff]
    %v784 = vld [vmem:[#allocation2 + $0x390] sm:$0xff]
    %v785 = vld [vmem:[#allocation2 + $0x398] sm:$0xff]
    %v786 = vld [vmem:[#allocation2 + $0x3a0] sm:$0xff]
    %v787 = vld [vmem:[#allocation2 + $0x3a8] sm:$0xff]
    %v788 = vld [vmem:[#allocation2 + $0x3b0] sm:$0xff]
    %v789 = vld [vmem:[#allocation2 + $0x3b8] sm:$0xff]
    %v790 = vld [vmem:[#allocation2 + $0x3c0] sm:$0xff]
    %v791 = vld [vmem:[#allocation2 + $0x3c8] sm:$0xff]
    %v792 = vld [vmem:[#allocation2 + $0x3d0] sm:$0xff]
    %v793 = vld [vmem:[#allocation2 + $0x3d8] sm:$0xff]
    %v794 = vld [vmem:[#allocation2 + $0x3e0] sm:$0xff]
    %v795 = vld [vmem:[#allocation2 + $0x3e8] sm:$0xff]
    %v796 = vld [vmem:[#allocation2 + $0x3f0] sm:$0xff]
    %v797 = vld [vmem:[#allocation2 + $0x3f8] sm:$0xff]
    %v862 = vunpack.c.l.b16 %v734
    %v863 = vunpack.c.h.b16 %v734
    %v864 = vunpack.c.l.b16 %v735
    %v865 = vunpack.c.h.b16 %v735
    %v866 = vunpack.c.l.b16 %v736
    %v867 = vunpack.c.h.b16 %v736
    %v868 = vunpack.c.l.b16 %v737
    %v869 = vunpack.c.h.b16 %v737
    %v870 = vunpack.c.l.b16 %v738
    %v871 = vunpack.c.h.b16 %v738
    %v872 = vunpack.c.l.b16 %v739
    %v873 = vunpack.c.h.b16 %v739
    %v874 = vunpack.c.l.b16 %v740
    %v875 = vunpack.c.h.b16 %v740
    %v876 = vunpack.c.l.b16 %v741
    %v877 = vunpack.c.h.b16 %v741
    %v878 = vunpack.c.l.b16 %v742
    %v879 = vunpack.c.h.b16 %v742
    %v880 = vunpack.c.l.b16 %v743
    %v881 = vunpack.c.h.b16 %v743
    %v882 = vunpack.c.l.b16 %v744
    %v883 = vunpack.c.h.b16 %v744
    %v884 = vunpack.c.l.b16 %v745
    %v885 = vunpack.c.h.b16 %v745
    %v886 = vunpack.c.l.b16 %v746
    %v887 = vunpack.c.h.b16 %v746
    %v888 = vunpack.c.l.b16 %v747
    %v889 = vunpack.c.h.b16 %v747
    %v890 = vunpack.c.l.b16 %v748
    %v891 = vunpack.c.h.b16 %v748
    %v892 = vunpack.c.l.b16 %v749
    %v893 = vunpack.c.h.b16 %v749
    %v894 = vunpack.c.l.b16 %v750
    %v895 = vunpack.c.h.b16 %v750
    %v896 = vunpack.c.l.b16 %v751
    %v897 = vunpack.c.h.b16 %v751
    %v898 = vunpack.c.l.b16 %v752
    %v899 = vunpack.c.h.b16 %v752
    %v900 = vunpack.c.l.b16 %v753
    %v901 = vunpack.c.h.b16 %v753
    %v902 = vunpack.c.l.b16 %v754
    %v903 = vunpack.c.h.b16 %v754
    %v904 = vunpack.c.l.b16 %v755
    %v905 = vunpack.c.h.b16 %v755
    %v906 = vunpack.c.l.b16 %v756
    %v907 = vunpack.c.h.b16 %v756
    %v908 = vunpack.c.l.b16 %v757
    %v909 = vunpack.c.h.b16 %v757
    %v910 = vunpack.c.l.b16 %v758
    %v911 = vunpack.c.h.b16 %v758
    %v912 = vunpack.c.l.b16 %v759
    %v913 = vunpack.c.h.b16 %v759
    %v914 = vunpack.c.l.b16 %v760
    %v915 = vunpack.c.h.b16 %v760
    %v916 = vunpack.c.l.b16 %v761
    %v917 = vunpack.c.h.b16 %v761
    %v918 = vunpack.c.l.b16 %v762
    %v919 = vunpack.c.h.b16 %v762
    %v920 = vunpack.c.l.b16 %v763
    %v921 = vunpack.c.h.b16 %v763
    %v922 = vunpack.c.l.b16 %v764
    %v923 = vunpack.c.h.b16 %v764
    %v924 = vunpack.c.l.b16 %v765
    %v925 = vunpack.c.h.b16 %v765
    %v926 = vunpack.c.l.b16 %v766
    %v927 = vunpack.c.h.b16 %v766
    %v928 = vunpack.c.l.b16 %v767
    %v929 = vunpack.c.h.b16 %v767
    %v930 = vunpack.c.l.b16 %v768
    %v931 = vunpack.c.h.b16 %v768
    %v932 = vunpack.c.l.b16 %v769
    %v933 = vunpack.c.h.b16 %v769
    %v934 = vunpack.c.l.b16 %v770
    %v935 = vunpack.c.h.b16 %v770
    %v936 = vunpack.c.l.b16 %v771
    %v937 = vunpack.c.h.b16 %v771
    %v938 = vunpack.c.l.b16 %v772
    %v939 = vunpack.c.h.b16 %v772
    %v940 = vunpack.c.l.b16 %v773
    %v941 = vunpack.c.h.b16 %v773
    %v942 = vunpack.c.l.b16 %v774
    %v943 = vunpack.c.h.b16 %v774
    %v944 = vunpack.c.l.b16 %v775
    %v945 = vunpack.c.h.b16 %v775
    %v946 = vunpack.c.l.b16 %v776
    %v947 = vunpack.c.h.b16 %v776
    %v948 = vunpack.c.l.b16 %v777
    %v949 = vunpack.c.h.b16 %v777
    %v950 = vunpack.c.l.b16 %v778
    %v951 = vunpack.c.h.b16 %v778
    %v952 = vunpack.c.l.b16 %v779
    %v953 = vunpack.c.h.b16 %v779
    %v954 = vunpack.c.l.b16 %v780
    %v955 = vunpack.c.h.b16 %v780
    %v956 = vunpack.c.l.b16 %v781
    %v957 = vunpack.c.h.b16 %v781
    %v958 = vunpack.c.l.b16 %v782
    %v959 = vunpack.c.h.b16 %v782
    %v960 = vunpack.c.l.b16 %v783
    %v961 = vunpack.c.h.b16 %v783
    %v962 = vunpack.c.l.b16 %v784
    %v963 = vunpack.c.h.b16 %v784
    %v964 = vunpack.c.l.b16 %v785
    %v965 = vunpack.c.h.b16 %v785
    %v966 = vunpack.c.l.b16 %v786
    %v967 = vunpack.c.h.b16 %v786
    %v968 = vunpack.c.l.b16 %v787
    %v969 = vunpack.c.h.b16 %v787
    %v970 = vunpack.c.l.b16 %v788
    %v971 = vunpack.c.h.b16 %v788
    %v972 = vunpack.c.l.b16 %v789
    %v973 = vunpack.c.h.b16 %v789
    %v974 = vunpack.c.l.b16 %v790
    %v975 = vunpack.c.h.b16 %v790
    %v976 = vunpack.c.l.b16 %v791
    %v977 = vunpack.c.h.b16 %v791
    %v978 = vunpack.c.l.b16 %v792
    %v979 = vunpack.c.h.b16 %v792
    %v980 = vunpack.c.l.b16 %v793
    %v981 = vunpack.c.h.b16 %v793
    %v982 = vunpack.c.l.b16 %v794
    %v983 = vunpack.c.h.b16 %v794
    %v984 = vunpack.c.l.b16 %v795
    %v985 = vunpack.c.h.b16 %v795
    %v986 = vunpack.c.l.b16 %v796
    %v987 = vunpack.c.h.b16 %v796
    %v988 = vunpack.c.l.b16 %v797
    %v989 = vunpack.c.h.b16 %v797
    %v990 = vpack.c.b16 %v866, %v862
    %v991 = vpack.c.b16 %v867, %v863
    %v992 = vpack.c.b16 %v868, %v864
    %v993 = vpack.c.b16 %v869, %v865
    %v994 = vpack.c.b16 %v874, %v870
    %v995 = vpack.c.b16 %v875, %v871
    %v996 = vpack.c.b16 %v876, %v872
    %v997 = vpack.c.b16 %v877, %v873
    %v998 = vpack.c.b16 %v882, %v878
    %v999 = vpack.c.b16 %v883, %v879
    %v1000 = vpack.c.b16 %v884, %v880
    %v1001 = vpack.c.b16 %v885, %v881
    %v1002 = vpack.c.b16 %v890, %v886
    %v1003 = vpack.c.b16 %v891, %v887
    %v1004 = vpack.c.b16 %v892, %v888
    %v1005 = vpack.c.b16 %v893, %v889
    %v1006 = vpack.c.b16 %v898, %v894
    %v1007 = vpack.c.b16 %v899, %v895
    %v1008 = vpack.c.b16 %v900, %v896
    %v1009 = vpack.c.b16 %v901, %v897
    %v1010 = vpack.c.b16 %v906, %v902
    %v1011 = vpack.c.b16 %v907, %v903
    %v1012 = vpack.c.b16 %v908, %v904
    %v1013 = vpack.c.b16 %v909, %v905
    %v1014 = vpack.c.b16 %v914, %v910
    %v1015 = vpack.c.b16 %v915, %v911
    %v1016 = vpack.c.b16 %v916, %v912
    %v1017 = vpack.c.b16 %v917, %v913
    %v1018 = vpack.c.b16 %v922, %v918
    %v1019 = vpack.c.b16 %v923, %v919
    %v1020 = vpack.c.b16 %v924, %v920
    %v1021 = vpack.c.b16 %v925, %v921
    %v1022 = vpack.c.b16 %v930, %v926
    %v1023 = vpack.c.b16 %v931, %v927
    %v1024 = vpack.c.b16 %v932, %v928
    %v1025 = vpack.c.b16 %v933, %v929
    %v1026 = vpack.c.b16 %v938, %v934
    %v1027 = vpack.c.b16 %v939, %v935
    %v1028 = vpack.c.b16 %v940, %v936
    %v1029 = vpack.c.b16 %v941, %v937
    %v1030 = vpack.c.b16 %v946, %v942
    %v1031 = vpack.c.b16 %v947, %v943
    %v1032 = vpack.c.b16 %v948, %v944
    %v1033 = vpack.c.b16 %v949, %v945
    %v1034 = vpack.c.b16 %v954, %v950
    %v1035 = vpack.c.b16 %v955, %v951
    %v1036 = vpack.c.b16 %v956, %v952
    %v1037 = vpack.c.b16 %v957, %v953
    %v1038 = vpack.c.b16 %v962, %v958
    %v1039 = vpack.c.b16 %v963, %v959
    %v1040 = vpack.c.b16 %v964, %v960
    %v1041 = vpack.c.b16 %v965, %v961
    %v1042 = vpack.c.b16 %v970, %v966
    %v1043 = vpack.c.b16 %v971, %v967
    %v1044 = vpack.c.b16 %v972, %v968
    %v1045 = vpack.c.b16 %v973, %v969
    %v1046 = vpack.c.b16 %v978, %v974
    %v1047 = vpack.c.b16 %v979, %v975
    %v1048 = vpack.c.b16 %v980, %v976
    %v1049 = vpack.c.b16 %v981, %v977
    %v1050 = vpack.c.b16 %v986, %v982
    %v1051 = vpack.c.b16 %v987, %v983
    %v1052 = vpack.c.b16 %v988, %v984
    %v1053 = vpack.c.b16 %v989, %v985
    %1118 = vmatpush.bf16.msra.mxu0 %v1018
    %1119 = vmatpush.bf16.msra.mxu0 %v1014
    %1120 = vmatpush.bf16.msra.mxu0 %v1010
    %1121 = vmatpush.bf16.msra.mxu0 %v1006
    %1122 = vmatpush.bf16.msra.mxu0 %v1002
    %1123 = vmatpush.bf16.msra.mxu0 %v998
    %1124 = vmatpush.bf16.msra.mxu0 %v994
    %1125 = vmatpush.bf16.msra.mxu0 %v990
    %1126 = vmatmul.bf16.gmra.mxu0 %v668
    %v1127 = vpop.f32.mrf.mxu0
    %v1128 = vadd.f32 0.0, %v1127
    %v1129 = vpop.f32.mrf.mxu0
    %1130 = vdwg.mxu0
    %1131 = vmatpush.bf16.msra.mxu0 %v1050
    %1132 = vmatpush.bf16.msra.mxu0 %v1046
    %1133 = vmatpush.bf16.msra.mxu0 %v1042
    %1134 = vmatpush.bf16.msra.mxu0 %v1038
    %1135 = vmatpush.bf16.msra.mxu0 %v1034
    %1136 = vmatpush.bf16.msra.mxu0 %v1030
    %1137 = vmatpush.bf16.msra.mxu0 %v1026
    %1138 = vmatpush.bf16.msra.mxu0 %v1022
    %1139 = vmatmul.bf16.gmra.mxu0 %v669
    %v1140 = vpop.f32.mrf.mxu0
    %v1141 = vadd.f32 %v1128, %v1140
    %v1142 = vpop.f32.mrf.mxu0
    %1143 = vdwg.mxu0
    %1144 = vmatpush.bf16.msra.mxu0 %v1019
    %1145 = vmatpush.bf16.msra.mxu0 %v1015
    %1146 = vmatpush.bf16.msra.mxu0 %v1011
    %1147 = vmatpush.bf16.msra.mxu0 %v1007
    %1148 = vmatpush.bf16.msra.mxu0 %v1003
    %1149 = vmatpush.bf16.msra.mxu0 %v999
    %1150 = vmatpush.bf16.msra.mxu0 %v995
    %1151 = vmatpush.bf16.msra.mxu0 %v991
    %1152 = vmatmul.bf16.gmra.mxu0 %v668
    %v1153 = vpop.f32.mrf.mxu0
    %v1154 = vadd.f32 0.0, %v1153
    %v1155 = vpop.f32.mrf.mxu0
    %1156 = vdwg.mxu0
    %1157 = vmatpush.bf16.msra.mxu0 %v1051
    %1158 = vmatpush.bf16.msra.mxu0 %v1047
    %1159 = vmatpush.bf16.msra.mxu0 %v1043
    %1160 = vmatpush.bf16.msra.mxu0 %v1039
    %1161 = vmatpush.bf16.msra.mxu0 %v1035
    %1162 = vmatpush.bf16.msra.mxu0 %v1031
    %1163 = vmatpush.bf16.msra.mxu0 %v1027
    %1164 = vmatpush.bf16.msra.mxu0 %v1023
    %1165 = vmatmul.bf16.gmra.mxu0 %v669
    %v1166 = vpop.f32.mrf.mxu0
    %v1167 = vadd.f32 %v1154, %v1166
    %v1168 = vpop.f32.mrf.mxu0
    %1169 = vdwg.mxu0
    %1170 = vmatpush.bf16.msra.mxu0 %v1020
    %1171 = vmatpush.bf16.msra.mxu0 %v1016
    %1172 = vmatpush.bf16.msra.mxu0 %v1012
    %1173 = vmatpush.bf16.msra.mxu0 %v1008
    %1174 = vmatpush.bf16.msra.mxu0 %v1004
    %1175 = vmatpush.bf16.msra.mxu0 %v1000
    %1176 = vmatpush.bf16.msra.mxu0 %v996
    %1177 = vmatpush.bf16.msra.mxu0 %v992
    %1178 = vmatmul.bf16.gmra.mxu0 %v668
    %v1179 = vpop.f32.mrf.mxu0
    %v1180 = vadd.f32 0.0, %v1179
    %v1181 = vpop.f32.mrf.mxu0
    %1182 = vdwg.mxu0
    %1183 = vmatpush.bf16.msra.mxu0 %v1052
    %1184 = vmatpush.bf16.msra.mxu0 %v1048
    %1185 = vmatpush.bf16.msra.mxu0 %v1044
    %1186 = vmatpush.bf16.msra.mxu0 %v1040
    %1187 = vmatpush.bf16.msra.mxu0 %v1036
    %1188 = vmatpush.bf16.msra.mxu0 %v1032
    %1189 = vmatpush.bf16.msra.mxu0 %v1028
    %1190 = vmatpush.bf16.msra.mxu0 %v1024
    %1191 = vmatmul.bf16.gmra.mxu0 %v669
    %v1192 = vpop.f32.mrf.mxu0
    %v1193 = vadd.f32 %v1180, %v1192
    %v1194 = vpop.f32.mrf.mxu0
    %1195 = vdwg.mxu0
    %1196 = vmatpush.bf16.msra.mxu0 %v1021
    %1197 = vmatpush.bf16.msra.mxu0 %v1017
    %1198 = vmatpush.bf16.msra.mxu0 %v1013
    %1199 = vmatpush.bf16.msra.mxu0 %v1009
    %1200 = vmatpush.bf16.msra.mxu0 %v1005
    %1201 = vmatpush.bf16.msra.mxu0 %v1001
    %1202 = vmatpush.bf16.msra.mxu0 %v997
    %1203 = vmatpush.bf16.msra.mxu0 %v993
    %1204 = vmatmul.bf16.gmra.mxu0 %v668
    %v1205 = vpop.f32.mrf.mxu0
    %v1206 = vadd.f32 0.0, %v1205
    %v1207 = vpop.f32.mrf.mxu0
    %1208 = vdwg.mxu0
    %1209 = vmatpush.bf16.msra.mxu0 %v1053
    %1210 = vmatpush.bf16.msra.mxu0 %v1049
    %1211 = vmatpush.bf16.msra.mxu0 %v1045
    %1212 = vmatpush.bf16.msra.mxu0 %v1041
    %1213 = vmatpush.bf16.msra.mxu0 %v1037
    %1214 = vmatpush.bf16.msra.mxu0 %v1033
    %1215 = vmatpush.bf16.msra.mxu0 %v1029
    %1216 = vmatpush.bf16.msra.mxu0 %v1025
    %1217 = vmatmul.bf16.gmra.mxu0 %v669
    %v1218 = vpop.f32.mrf.mxu0
    %v1219 = vadd.f32 %v1206, %v1218
    %v1220 = vpop.f32.mrf.mxu0
    %1221 = vdwg.mxu0
    %v1286 = vunpack.c.l.b16 %v670
    %v1287 = vunpack.c.h.b16 %v670
    %v1288 = vunpack.c.l.b16 %v671
    %v1289 = vunpack.c.h.b16 %v671
    %v1290 = vunpack.c.l.b16 %v672
    %v1291 = vunpack.c.h.b16 %v672
    %v1292 = vunpack.c.l.b16 %v673
    %v1293 = vunpack.c.h.b16 %v673
    %v1294 = vunpack.c.l.b16 %v674
    %v1295 = vunpack.c.h.b16 %v674
    %v1296 = vunpack.c.l.b16 %v675
    %v1297 = vunpack.c.h.b16 %v675
    %v1298 = vunpack.c.l.b16 %v676
    %v1299 = vunpack.c.h.b16 %v676
    %v1300 = vunpack.c.l.b16 %v677
    %v1301 = vunpack.c.h.b16 %v677
    %v1302 = vunpack.c.l.b16 %v678
    %v1303 = vunpack.c.h.b16 %v678
    %v1304 = vunpack.c.l.b16 %v679
    %v1305 = vunpack.c.h.b16 %v679
    %v1306 = vunpack.c.l.b16 %v680
    %v1307 = vunpack.c.h.b16 %v680
    %v1308 = vunpack.c.l.b16 %v681
    %v1309 = vunpack.c.h.b16 %v681
    %v1310 = vunpack.c.l.b16 %v682
    %v1311 = vunpack.c.h.b16 %v682
    %v1312 = vunpack.c.l.b16 %v683
    %v1313 = vunpack.c.h.b16 %v683
    %v1314 = vunpack.c.l.b16 %v684
    %v1315 = vunpack.c.h.b16 %v684
    %v1316 = vunpack.c.l.b16 %v685
    %v1317 = vunpack.c.h.b16 %v685
    %v1318 = vunpack.c.l.b16 %v686
    %v1319 = vunpack.c.h.b16 %v686
    %v1320 = vunpack.c.l.b16 %v687
    %v1321 = vunpack.c.h.b16 %v687
    %v1322 = vunpack.c.l.b16 %v688
    %v1323 = vunpack.c.h.b16 %v688
    %v1324 = vunpack.c.l.b16 %v689
    %v1325 = vunpack.c.h.b16 %v689
    %v1326 = vunpack.c.l.b16 %v690
    %v1327 = vunpack.c.h.b16 %v690
    %v1328 = vunpack.c.l.b16 %v691
    %v1329 = vunpack.c.h.b16 %v691
    %v1330 = vunpack.c.l.b16 %v692
    %v1331 = vunpack.c.h.b16 %v692
    %v1332 = vunpack.c.l.b16 %v693
    %v1333 = vunpack.c.h.b16 %v693
    %v1334 = vunpack.c.l.b16 %v694
    %v1335 = vunpack.c.h.b16 %v694
    %v1336 = vunpack.c.l.b16 %v695
    %v1337 = vunpack.c.h.b16 %v695
    %v1338 = vunpack.c.l.b16 %v696
    %v1339 = vunpack.c.h.b16 %v696
    %v1340 = vunpack.c.l.b16 %v697
    %v1341 = vunpack.c.h.b16 %v697
    %v1342 = vunpack.c.l.b16 %v698
    %v1343 = vunpack.c.h.b16 %v698
    %v1344 = vunpack.c.l.b16 %v699
    %v1345 = vunpack.c.h.b16 %v699
    %v1346 = vunpack.c.l.b16 %v700
    %v1347 = vunpack.c.h.b16 %v700
    %v1348 = vunpack.c.l.b16 %v701
    %v1349 = vunpack.c.h.b16 %v701
    %v1350 = vunpack.c.l.b16 %v702
    %v1351 = vunpack.c.h.b16 %v702
    %v1352 = vunpack.c.l.b16 %v703
    %v1353 = vunpack.c.h.b16 %v703
    %v1354 = vunpack.c.l.b16 %v704
    %v1355 = vunpack.c.h.b16 %v704
    %v1356 = vunpack.c.l.b16 %v705
    %v1357 = vunpack.c.h.b16 %v705
    %v1358 = vunpack.c.l.b16 %v706
    %v1359 = vunpack.c.h.b16 %v706
    %v1360 = vunpack.c.l.b16 %v707
    %v1361 = vunpack.c.h.b16 %v707
    %v1362 = vunpack.c.l.b16 %v708
    %v1363 = vunpack.c.h.b16 %v708
    %v1364 = vunpack.c.l.b16 %v709
    %v1365 = vunpack.c.h.b16 %v709
    %v1366 = vunpack.c.l.b16 %v710
    %v1367 = vunpack.c.h.b16 %v710
    %v1368 = vunpack.c.l.b16 %v711
    %v1369 = vunpack.c.h.b16 %v711
    %v1370 = vunpack.c.l.b16 %v712
    %v1371 = vunpack.c.h.b16 %v712
    %v1372 = vunpack.c.l.b16 %v713
    %v1373 = vunpack.c.h.b16 %v713
    %v1374 = vunpack.c.l.b16 %v714
    %v1375 = vunpack.c.h.b16 %v714
    %v1376 = vunpack.c.l.b16 %v715
    %v1377 = vunpack.c.h.b16 %v715
    %v1378 = vunpack.c.l.b16 %v716
    %v1379 = vunpack.c.h.b16 %v716
    %v1380 = vunpack.c.l.b16 %v717
    %v1381 = vunpack.c.h.b16 %v717
    %v1382 = vunpack.c.l.b16 %v718
    %v1383 = vunpack.c.h.b16 %v718
    %v1384 = vunpack.c.l.b16 %v719
    %v1385 = vunpack.c.h.b16 %v719
    %v1386 = vunpack.c.l.b16 %v720
    %v1387 = vunpack.c.h.b16 %v720
    %v1388 = vunpack.c.l.b16 %v721
    %v1389 = vunpack.c.h.b16 %v721
    %v1390 = vunpack.c.l.b16 %v722
    %v1391 = vunpack.c.h.b16 %v722
    %v1392 = vunpack.c.l.b16 %v723
    %v1393 = vunpack.c.h.b16 %v723
    %v1394 = vunpack.c.l.b16 %v724
    %v1395 = vunpack.c.h.b16 %v724
    %v1396 = vunpack.c.l.b16 %v725
    %v1397 = vunpack.c.h.b16 %v725
    %v1398 = vunpack.c.l.b16 %v726
    %v1399 = vunpack.c.h.b16 %v726
    %v1400 = vunpack.c.l.b16 %v727
    %v1401 = vunpack.c.h.b16 %v727
    %v1402 = vunpack.c.l.b16 %v728
    %v1403 = vunpack.c.h.b16 %v728
    %v1404 = vunpack.c.l.b16 %v729
    %v1405 = vunpack.c.h.b16 %v729
    %v1406 = vunpack.c.l.b16 %v730
    %v1407 = vunpack.c.h.b16 %v730
    %v1408 = vunpack.c.l.b16 %v731
    %v1409 = vunpack.c.h.b16 %v731
    %v1410 = vunpack.c.l.b16 %v732
    %v1411 = vunpack.c.h.b16 %v732
    %v1412 = vunpack.c.l.b16 %v733
    %v1413 = vunpack.c.h.b16 %v733
    %v1414 = vpack.c.b16 %v1290, %v1286
    %v1415 = vpack.c.b16 %v1291, %v1287
    %v1416 = vpack.c.b16 %v1292, %v1288
    %v1417 = vpack.c.b16 %v1293, %v1289
    %v1418 = vpack.c.b16 %v1298, %v1294
    %v1419 = vpack.c.b16 %v1299, %v1295
    %v1420 = vpack.c.b16 %v1300, %v1296
    %v1421 = vpack.c.b16 %v1301, %v1297
    %v1422 = vpack.c.b16 %v1306, %v1302
    %v1423 = vpack.c.b16 %v1307, %v1303
    %v1424 = vpack.c.b16 %v1308, %v1304
    %v1425 = vpack.c.b16 %v1309, %v1305
    %v1426 = vpack.c.b16 %v1314, %v1310
    %v1427 = vpack.c.b16 %v1315, %v1311
    %v1428 = vpack.c.b16 %v1316, %v1312
    %v1429 = vpack.c.b16 %v1317, %v1313
    %v1430 = vpack.c.b16 %v1322, %v1318
    %v1431 = vpack.c.b16 %v1323, %v1319
    %v1432 = vpack.c.b16 %v1324, %v1320
    %v1433 = vpack.c.b16 %v1325, %v1321
    %v1434 = vpack.c.b16 %v1330, %v1326
    %v1435 = vpack.c.b16 %v1331, %v1327
    %v1436 = vpack.c.b16 %v1332, %v1328
    %v1437 = vpack.c.b16 %v1333, %v1329
    %v1438 = vpack.c.b16 %v1338, %v1334
    %v1439 = vpack.c.b16 %v1339, %v1335
    %v1440 = vpack.c.b16 %v1340, %v1336
    %v1441 = vpack.c.b16 %v1341, %v1337
    %v1442 = vpack.c.b16 %v1346, %v1342
    %v1443 = vpack.c.b16 %v1347, %v1343
    %v1444 = vpack.c.b16 %v1348, %v1344
    %v1445 = vpack.c.b16 %v1349, %v1345
    %v1446 = vpack.c.b16 %v1354, %v1350
    %v1447 = vpack.c.b16 %v1355, %v1351
    %v1448 = vpack.c.b16 %v1356, %v1352
    %v1449 = vpack.c.b16 %v1357, %v1353
    %v1450 = vpack.c.b16 %v1362, %v1358
    %v1451 = vpack.c.b16 %v1363, %v1359
    %v1452 = vpack.c.b16 %v1364, %v1360
    %v1453 = vpack.c.b16 %v1365, %v1361
    %v1454 = vpack.c.b16 %v1370, %v1366
    %v1455 = vpack.c.b16 %v1371, %v1367
    %v1456 = vpack.c.b16 %v1372, %v1368
    %v1457 = vpack.c.b16 %v1373, %v1369
    %v1458 = vpack.c.b16 %v1378, %v1374
    %v1459 = vpack.c.b16 %v1379, %v1375
    %v1460 = vpack.c.b16 %v1380, %v1376
    %v1461 = vpack.c.b16 %v1381, %v1377
    %v1462 = vpack.c.b16 %v1386, %v1382
    %v1463 = vpack.c.b16 %v1387, %v1383
    %v1464 = vpack.c.b16 %v1388, %v1384
    %v1465 = vpack.c.b16 %v1389, %v1385
    %v1466 = vpack.c.b16 %v1394, %v1390
    %v1467 = vpack.c.b16 %v1395, %v1391
    %v1468 = vpack.c.b16 %v1396, %v1392
    %v1469 = vpack.c.b16 %v1397, %v1393
    %v1470 = vpack.c.b16 %v1402, %v1398
    %v1471 = vpack.c.b16 %v1403, %v1399
    %v1472 = vpack.c.b16 %v1404, %v1400
    %v1473 = vpack.c.b16 %v1405, %v1401
    %v1474 = vpack.c.b16 %v1410, %v1406
    %v1475 = vpack.c.b16 %v1411, %v1407
    %v1476 = vpack.c.b16 %v1412, %v1408
    %v1477 = vpack.c.b16 %v1413, %v1409
    %1542 = vmatpush.bf16.msra.mxu0 %v1442
    %1543 = vmatpush.bf16.msra.mxu0 %v1438
    %1544 = vmatpush.bf16.msra.mxu0 %v1434
    %1545 = vmatpush.bf16.msra.mxu0 %v1430
    %1546 = vmatpush.bf16.msra.mxu0 %v1426
    %1547 = vmatpush.bf16.msra.mxu0 %v1422
    %1548 = vmatpush.bf16.msra.mxu0 %v1418
    %1549 = vmatpush.bf16.msra.mxu0 %v1414
    %1550 = vmatmul.bf16.gmra.mxu0 %v358
    %v1551 = vpop.f32.mrf.mxu0
    %v1552 = vadd.f32 %v1141, %v1551
    %v1553 = vpop.f32.mrf.mxu0
    %1554 = vdwg.mxu0
    %1555 = vmatpush.bf16.msra.mxu0 %v1474
    %1556 = vmatpush.bf16.msra.mxu0 %v1470
    %1557 = vmatpush.bf16.msra.mxu0 %v1466
    %1558 = vmatpush.bf16.msra.mxu0 %v1462
    %1559 = vmatpush.bf16.msra.mxu0 %v1458
    %1560 = vmatpush.bf16.msra.mxu0 %v1454
    %1561 = vmatpush.bf16.msra.mxu0 %v1450
    %1562 = vmatpush.bf16.msra.mxu0 %v1446
    %1563 = vmatmul.bf16.gmra.mxu0 %v359
    %v1564 = vpop.f32.mrf.mxu0
    %v1565 = vadd.f32 %v1552, %v1564
    %v1566 = vpop.f32.mrf.mxu0
    %1567 = vdwg.mxu0
    %1568 = vmatpush.bf16.msra.mxu0 %v1443
    %1569 = vmatpush.bf16.msra.mxu0 %v1439
    %1570 = vmatpush.bf16.msra.mxu0 %v1435
    %1571 = vmatpush.bf16.msra.mxu0 %v1431
    %1572 = vmatpush.bf16.msra.mxu0 %v1427
    %1573 = vmatpush.bf16.msra.mxu0 %v1423
    %1574 = vmatpush.bf16.msra.mxu0 %v1419
    %1575 = vmatpush.bf16.msra.mxu0 %v1415
    %1576 = vmatmul.bf16.gmra.mxu0 %v358
    %v1577 = vpop.f32.mrf.mxu0
    %v1578 = vadd.f32 %v1167, %v1577
    %v1579 = vpop.f32.mrf.mxu0
    %1580 = vdwg.mxu0
    %1581 = vmatpush.bf16.msra.mxu0 %v1475
    %1582 = vmatpush.bf16.msra.mxu0 %v1471
    %1583 = vmatpush.bf16.msra.mxu0 %v1467
    %1584 = vmatpush.bf16.msra.mxu0 %v1463
    %1585 = vmatpush.bf16.msra.mxu0 %v1459
    %1586 = vmatpush.bf16.msra.mxu0 %v1455
    %1587 = vmatpush.bf16.msra.mxu0 %v1451
    %1588 = vmatpush.bf16.msra.mxu0 %v1447
    %1589 = vmatmul.bf16.gmra.mxu0 %v359
    %v1590 = vpop.f32.mrf.mxu0
    %v1591 = vadd.f32 %v1578, %v1590
    %v1592 = vpop.f32.mrf.mxu0
    %1593 = vdwg.mxu0
    %1594 = vmatpush.bf16.msra.mxu0 %v1444
    %1595 = vmatpush.bf16.msra.mxu0 %v1440
    %1596 = vmatpush.bf16.msra.mxu0 %v1436
    %1597 = vmatpush.bf16.msra.mxu0 %v1432
    %1598 = vmatpush.bf16.msra.mxu0 %v1428
    %1599 = vmatpush.bf16.msra.mxu0 %v1424
    %1600 = vmatpush.bf16.msra.mxu0 %v1420
    %1601 = vmatpush.bf16.msra.mxu0 %v1416
    %1602 = vmatmul.bf16.gmra.mxu0 %v358
    %v1603 = vpop.f32.mrf.mxu0
    %v1604 = vadd.f32 %v1193, %v1603
    %v1605 = vpop.f32.mrf.mxu0
    %1606 = vdwg.mxu0
    %1607 = vmatpush.bf16.msra.mxu0 %v1476
    %1608 = vmatpush.bf16.msra.mxu0 %v1472
    %1609 = vmatpush.bf16.msra.mxu0 %v1468
    %1610 = vmatpush.bf16.msra.mxu0 %v1464
    %1611 = vmatpush.bf16.msra.mxu0 %v1460
    %1612 = vmatpush.bf16.msra.mxu0 %v1456
    %1613 = vmatpush.bf16.msra.mxu0 %v1452
    %1614 = vmatpush.bf16.msra.mxu0 %v1448
    %1615 = vmatmul.bf16.gmra.mxu0 %v359
    %v1616 = vpop.f32.mrf.mxu0
    %v1617 = vadd.f32 %v1604, %v1616
    %v1618 = vpop.f32.mrf.mxu0
    %1619 = vdwg.mxu0
    %1620 = vmatpush.bf16.msra.mxu0 %v1445
    %1621 = vmatpush.bf16.msra.mxu0 %v1441
    %1622 = vmatpush.bf16.msra.mxu0 %v1437
    %1623 = vmatpush.bf16.msra.mxu0 %v1433
    %1624 = vmatpush.bf16.msra.mxu0 %v1429
    %1625 = vmatpush.bf16.msra.mxu0 %v1425
    %1626 = vmatpush.bf16.msra.mxu0 %v1421
    %1627 = vmatpush.bf16.msra.mxu0 %v1417
    %1628 = vmatmul.bf16.gmra.mxu0 %v358
    %v1629 = vpop.f32.mrf.mxu0
    %v1630 = vadd.f32 %v1219, %v1629
    %v1631 = vpop.f32.mrf.mxu0
    %1632 = vdwg.mxu0
    %1633 = vmatpush.bf16.msra.mxu0 %v1477
    %1634 = vmatpush.bf16.msra.mxu0 %v1473
    %1635 = vmatpush.bf16.msra.mxu0 %v1469
    %1636 = vmatpush.bf16.msra.mxu0 %v1465
    %1637 = vmatpush.bf16.msra.mxu0 %v1461
    %1638 = vmatpush.bf16.msra.mxu0 %v1457
    %1639 = vmatpush.bf16.msra.mxu0 %v1453
    %1640 = vmatpush.bf16.msra.mxu0 %v1449
    %1641 = vmatmul.bf16.gmra.mxu0 %v359
    %v1642 = vpop.f32.mrf.mxu0
    %v1643 = vadd.f32 %v1630, %v1642
    %v1644 = vpop.f32.mrf.mxu0
    %1645 = vdwg.mxu0
    %v1646 = vld [vmem:[%s3] sm:$0xf]
    %v1648 = vperm.slane %v1646, 0
    %v1649 = vperm.slane %v1646, 1
    %v1650 = vperm.slane %v1646, 2
    %v1651 = vperm.slane %v1646, 3
    %v1656 = vadd.f32 %v1565, %v1648
    %v1657 = vadd.f32 %v1591, %v1649
    %v1658 = vadd.f32 %v1617, %v1650
    %v1659 = vadd.f32 %v1643, %v1651
    %v1660 = vxor.u32 %v1656, 2147483648
    %v1661 = vxor.u32 %v1657, 2147483648
    %v1662 = vxor.u32 %v1658, 2147483648
    %v1663 = vxor.u32 %v1659, 2147483648
    %v1664 = vmul.f32 %v1660, 1.442695
    %v1665 = vpow.pop %v1664
    %v1666 = vmul.f32 %v1661, 1.442695
    %v1667 = vpow.pop %v1666
    %v1668 = vmul.f32 %v1662, 1.442695
    %v1669 = vpow.pop %v1668
    %v1670 = vmul.f32 %v1663, 1.442695
    %v1671 = vpow.pop %v1670
    %v1672 = vadd.f32 %v1665, 1.0
    %v1673 = vadd.f32 %v1667, 1.0
    %v1674 = vadd.f32 %v1669, 1.0
    %v1675 = vadd.f32 %v1671, 1.0
    %v1676 = vrcp.pop %v1672
    %v1677 = vmul.f32 %v1672, %v1676
    %v1678 = vsub.f32 1.0, %v1677
    %v1679 = vmul.f32 %v1676, %v1678
    %v1680 = vadd.f32 %v1676, %v1679
    %vm1681 = vweird.f32 %v1672
    %vm1682 = vweird.f32 %v1676
    %vm1683 = vmor %vm1681, %vm1682
    %v1684 = vsel %vm1683, %v1676, %v1680
    %v1685 = vand.u32 2147483647, %v1672
    %vm1686 = vcmp.eq.f32.partialorder %v1685, 8.507059e+37
    %v1687 = vand.u32 %v1672, 2147483648
    %v1688 = vor.u32 1.1754944e-38, %v1687
    %v1689 = vsel %vm1686, %v1688, %v1684
    %v1690 = vmul.f32 1.0, %v1689
    %v1691 = vrcp.pop %v1673
    %v1692 = vmul.f32 %v1673, %v1691
    %v1693 = vsub.f32 1.0, %v1692
    %v1694 = vmul.f32 %v1691, %v1693
    %v1695 = vadd.f32 %v1691, %v1694
    %vm1696 = vweird.f32 %v1673
    %vm1697 = vweird.f32 %v1691
    %vm1698 = vmor %vm1696, %vm1697
    %v1699 = vsel %vm1698, %v1691, %v1695
    %v1700 = vand.u32 2147483647, %v1673
    %vm1701 = vcmp.eq.f32.partialorder %v1700, 8.507059e+37
    %v1702 = vand.u32 %v1673, 2147483648
    %v1703 = vor.u32 1.1754944e-38, %v1702
    %v1704 = vsel %vm1701, %v1703, %v1699
    %v1705 = vmul.f32 1.0, %v1704
    %v1706 = vrcp.pop %v1674
    %v1707 = vmul.f32 %v1674, %v1706
    %v1708 = vsub.f32 1.0, %v1707
    %v1709 = vmul.f32 %v1706, %v1708
    %v1710 = vadd.f32 %v1706, %v1709
    %vm1711 = vweird.f32 %v1674
    %vm1712 = vweird.f32 %v1706
    %vm1713 = vmor %vm1711, %vm1712
    %v1714 = vsel %vm1713, %v1706, %v1710
    %v1715 = vand.u32 2147483647, %v1674
    %vm1716 = vcmp.eq.f32.partialorder %v1715, 8.507059e+37
    %v1717 = vand.u32 %v1674, 2147483648
    %v1718 = vor.u32 1.1754944e-38, %v1717
    %v1719 = vsel %vm1716, %v1718, %v1714
    %v1720 = vmul.f32 1.0, %v1719
    %v1721 = vrcp.pop %v1675
    %v1722 = vmul.f32 %v1675, %v1721
    %v1723 = vsub.f32 1.0, %v1722
    %v1724 = vmul.f32 %v1721, %v1723
    %v1725 = vadd.f32 %v1721, %v1724
    %vm1726 = vweird.f32 %v1675
    %vm1727 = vweird.f32 %v1721
    %vm1728 = vmor %vm1726, %vm1727
    %v1729 = vsel %vm1728, %v1721, %v1725
    %v1730 = vand.u32 2147483647, %v1675
    %vm1731 = vcmp.eq.f32.partialorder %v1730, 8.507059e+37
    %v1732 = vand.u32 %v1675, 2147483648
    %v1733 = vor.u32 1.1754944e-38, %v1732
    %v1734 = vsel %vm1731, %v1733, %v1729
    %v1735 = vmul.f32 1.0, %v1734
    %v1736 = vmul.f32 %v1656, %v1690
    %v1737 = vmul.f32 %v1657, %v1705
    %v1738 = vmul.f32 %v1658, %v1720
    %v1739 = vmul.f32 %v1659, %v1735
    %1740 = vst [vmem:[#allocation5] sm:$0xff] %v1736
    %1741 = vst [vmem:[#allocation5 + $0x8] sm:$0xff] %v1737
    %1742 = vst [vmem:[#allocation5 + $0x10] sm:$0xff] %v1738
    %1743 = vst [vmem:[#allocation5 + $0x18] sm:$0xff] %v1739
    // Predicated region
    $region22: #{tpu_custom_call.1} parent=1 // pred_check
      _
    $region23: #{tpu_custom_call.1} parent=1 // pred_check_branch
      %1745 = sbr.rel (0) target = $region25
    $region24: #{tpu_custom_call.1} parent=1 // pred_region
      %1747 = vsyncadd [#allocation4], 0
      %s1749 = sshll.u32 [#allocation5], 4
      %s1750 = int_to_ptr.vmem [resolvable:$true] %s1749
      %s1751 = sshll.u32 %s4, 4
      %s1752 = int_to_ptr.hbm [resolvable:$true] %s1751
      %1754 = dma.vmem_to_hbm [thread:$0]  %s1750, 512, %s1752, [#allocation4]
    $region25: #{tpu_custom_call.1} parent=1 // pred_fallthru
      _
    // Predicated region
    $region26: #{tpu_custom_call.1} parent=1 // pred_check
      _
    $region27: #{tpu_custom_call.1} parent=1 // pred_check_branch
      %1756 = sbr.rel (0) target = $region29
    $region28: #{tpu_custom_call.1} parent=1 // pred_region
      %1758 = dma.done [#allocation4], 512
    $region29: #{tpu_custom_call.1} parent=1 // pred_fallthru
      _
    %1759 = vsyncpa [#allocation3], 1
    %1760 = vsyncpa [#allocation4], 1

</llo_original>
